<compile_context>
chip_gen: v6e
topology: v6e:2x2x1
jax: 0.10.0
libtpu: 0.0.40
codegen_flags: <defaults>
</compile_context>

<pallas_src>
import functools

import jax
import jax.numpy as jnp
from jax import lax
from jax.experimental import pallas as pl
from jax.experimental.pallas import tpu as pltpu

EPS = 1e-5          # InstanceNorm3d default eps
NEG_SLOPE = 0.01    # LeakyReLU default negative_slope


def _round_up(v, m):
    return (v + m - 1) // m * m


def _cdiv(a, b):
    return -(-a // b)


def _vmem_capacity_bytes(default_bytes=64 << 20):
    """Per-core VMEM capacity (generation-aware); conservative fallback if unavailable."""
    try:
        cap = getattr(pltpu.get_tpu_info(), "vmem_capacity_bytes", None)
        if cap:
            return int(cap)
    except Exception:
        pass
    return default_bytes


def _pick_depth_tile(d, c, hw, itemsize, budget_bytes):
    """Largest depth tile (multiple of 8, or == D) whose DOUBLE-BUFFERED x block fits budget."""
    if d <= 8:
        return d
    hw_pad = _round_up(hw, 128)

    def db_bytes(t):  # double-buffered input block footprint (what the pipeline really allocates)
        return 2 * c * _round_up(t, 8) * hw_pad * itemsize

    cands = sorted(set([d] + list(range(8, _round_up(d, 8) + 1, 8))))
    fitting = [t for t in cands if db_bytes(t) <= budget_bytes]
    if not fitting:
        return 8  # smallest legal tile; never silently fall back to a full-D tile
    # fewest grid steps first, then prefer exact divisors of D (no masked tail), then larger tiles
    return min(fitting, key=lambda t: (_cdiv(d, t), (d % t) != 0, -t))


def _coord_att_kernel(x_ref, e_ref, w1t_ref, b1_ref, wdhw_ref, bdhw_ref,
                      out_ref, acc_seq_ref, acc_hw_ref,
                      *, d_sz, h_sz, w_sz, dt_sz, l_sz, needs_mask):
    si = pl.program_id(1)
    n_s = pl.num_programs(1)

    @pl.when(si == 0)
    def _init():
        acc_seq_ref[...] = jnp.zeros_like(acc_seq_ref)
        acc_hw_ref[...] = jnp.zeros_like(acc_hw_ref)

    # ---------------- streaming phase (every depth tile) ----------------
    xb = x_ref[0]                                        # (C, Dt, H*W) in the input's native dtype
    if needs_mask:
        # last depth tile can extend past D: zero the out-of-range depth rows (static branch)
        d_idx = si * dt_sz + lax.broadcasted_iota(jnp.int32, xb.shape, 1)
        xb = jnp.where(d_idx < d_sz, xb, jnp.zeros((), xb.dtype))

    # depth means for the Dt depth slices owned by this step (f32 accumulation, no f32 tile temp)
    depth_means = jnp.sum(xb, axis=-1, dtype=jnp.float32) * (1.0 / (h_sz * w_sz))   # (C, Dt)
    start = pl.multiple_of(si * dt_sz, dt_sz)
    acc_seq_ref[pl.ds(start, dt_sz), :] = depth_means.T                             # (Dt, C) rows
    # running sum over depth at full H*W resolution (used for H/W pooling in the epilogue)
    acc_hw_ref[...] += jnp.sum(xb, axis=1, dtype=jnp.float32)                       # (C, H*W)

    # ---------------- epilogue (once per batch element) ----------------
    @pl.when(si == n_s - 1)
    def _epilogue():
        # height/width means via one MXU matmul against the (H*W, H+W) selection/averaging matrix
        hw_means = jnp.dot(acc_hw_ref[...], e_ref[...],
                           preferred_element_type=jnp.float32)                      # (C, H+W)
        acc_seq_ref[d_sz:d_sz + h_sz + w_sz, :] = hw_means.T                        # rows [D, D+H+W)

        slab = acc_seq_ref[...]                                                     # (Lpad, C)

        # fusion 1x1x1 conv (C -> mid, mid zero-padded to 128 lanes -> lane-dense epilogue)
        fused = jnp.dot(slab, w1t_ref[...],
                        preferred_element_type=jnp.float32) + b1_ref[...]           # (Lpad, MIDp)

        # InstanceNorm3d over the L valid positions (biased variance, eps=1e-5)
        rows = lax.broadcasted_iota(jnp.int32, fused.shape, 0)
        valid = rows < l_sz
        inv_l = 1.0 / l_sz
        mu = jnp.sum(jnp.where(valid, fused, 0.0), axis=0, keepdims=True) * inv_l
        diff = fused - mu
        var = jnp.sum(jnp.where(valid, diff * diff, 0.0), axis=0, keepdims=True) * inv_l
        normed = diff * lax.rsqrt(var + EPS)
        act = jnp.where(normed >= 0, normed, NEG_SLOPE * normed)                    # LeakyReLU

        # fused depth/height/width 1x1x1 convs (mid -> 3C, lane-padded) + sigmoid
        logits = jnp.dot(act, wdhw_ref[...],
                         preferred_element_type=jnp.float32) + bdhw_ref[...]        # (Lpad, 3Cpad)
        out_ref[0] = jax.nn.sigmoid(logits).astype(out_ref.dtype)


def coord_att_block(x, params, *, depth_tile=None, tile_target_bytes=None,
                    core_parallel_batch=False):
    """Pallas implementation of CoordAttBlock.forward.

    Returns (width_weight, height_weight, depth_weight) in float32 with PyTorch shapes
    (b,C,1,1,W), (b,C,1,H,1), (b,C,D,1,1).

    tile_target_bytes is the budget for the DOUBLE-BUFFERED x blocks; it defaults to roughly
    half of the usable per-core VMEM of the current TPU generation.
    """
    b, c, d, h, w = x.shape
    hw = h * w
    l = d + h + w
    mid = params["w1"].shape[0]
    midpad = _round_up(mid, 128)
    c3 = 3 * c
    c3pad = _round_up(c3, 128)

    itemsize = jnp.dtype(x.dtype).itemsize
    vmem_cap = _vmem_capacity_bytes()
    usable_vmem = max(vmem_cap - (16 << 20), 16 << 20)          # leave compiler headroom
    if tile_target_bytes is None:
        tile_target_bytes = usable_vmem // 2
    if depth_tile is None:
        depth_tile = _pick_depth_tile(d, c, hw, itemsize, tile_target_bytes)
    assert depth_tile == d or depth_tile % 8 == 0, (
        "depth_tile must be a multiple of 8 (or equal to D)")
    n_d = _cdiv(d, depth_tile)
    needs_mask = (d % depth_tile) != 0

    # slab rows: [0,D) depth means, [D,D+H+W) height/width means; large enough for a ragged tail
    lpad = _round_up(max(l, n_d * depth_tile), 128)

    # lane-dense view of x: flattened H*W on the minor (lane) axis (free reshape)
    x2 = x.reshape(b, c, d, hw)

    # selection / averaging matrix: acc_hw (C, H*W) @ E -> [height means | width means]
    k = jnp.arange(hw)
    e_h = (k[:, None] // w == jnp.arange(h)[None, :]).astype(jnp.float32) / (d * w)
    e_w = (k[:, None] % w == jnp.arange(w)[None, :]).astype(jnp.float32) / (d * h)
    e_mat = jnp.concatenate([e_h, e_w], axis=1)                          # (H*W, H+W)

    # fusion conv weights: positions on sublanes, channels on lanes; mid zero-padded to 128 lanes
    w1_t = jnp.zeros((c, midpad), jnp.float32).at[:, :mid].set(
        params["w1"].astype(jnp.float32).T)                              # (C, MIDp)
    b1_row = jnp.zeros((1, midpad), jnp.float32).at[:, :mid].set(
        params["b1"].astype(jnp.float32).reshape(1, mid))                # (1, MIDp)

    # stack depth/height/width convs into one mid -> 3C (lane padded) matmul
    w_dhw = jnp.concatenate([params["wd"], params["wh"], params["ww"]], axis=0)   # (3C, mid)
    b_dhw = jnp.concatenate([params["bd"], params["bh"], params["bw"]], axis=0)   # (3C, 1)
    w_dhw_t = jnp.zeros((midpad, c3pad), jnp.float32).at[:mid, :c3].set(
        w_dhw.astype(jnp.float32).T)                                     # (MIDp, 3Cpad)
    b_dhw_row = jnp.zeros((1, c3pad), jnp.float32).at[:, :c3].set(
        b_dhw.astype(jnp.float32).reshape(1, c3))                        # (1, 3Cpad)

    kernel = functools.partial(_coord_att_kernel, d_sz=d, h_sz=h, w_sz=w,
                               dt_sz=depth_tile, l_sz=l, needs_mask=needs_mask)

    # VMEM estimate: double-buffered x block (no f32 upcast temp any more), double-buffered
    # constants and output blocks, plus the two f32 scratch accumulators.
    hw_pad = _round_up(hw, 128)
    x_tile_bytes = c * _round_up(depth_tile, 8) * hw_pad * itemsize
    const_bytes = (_round_up(hw, 8) * _round_up(h + w, 128)      # E
                   + _round_up(c, 8) * midpad                    # w1^T
                   + 8 * midpad                                   # b1
                   + midpad * c3pad                               # stacked conv w^T
                   + 8 * c3pad) * 4                               # stacked conv bias
    scratch_bytes = (lpad * _round_up(c, 128) + _round_up(c, 8) * hw_pad) * 4
    out_bytes = lpad * c3pad * 4
    vmem_est = (2 * x_tile_bytes + 2 * const_bytes + 2 * out_bytes
                + scratch_bytes + (4 << 20))
    vmem_limit = int(min(max(vmem_est, 32 << 20), usable_vmem))

    # v7x dual-TensorCore sharding of the batch axis is opt-in (plain "parallel" is the safe
    # default on single-TC generations).
    batch_sem = pltpu.CORE_PARALLEL if core_parallel_batch else "parallel"

    in_specs = [
        pl.BlockSpec((1, c, depth_tile, hw), lambda bi, si: (bi, 0, si, 0)),  # x (tiled over D)
        pl.BlockSpec((hw, h + w), lambda bi, si: (0, 0)),                     # E
        pl.BlockSpec((c, midpad), lambda bi, si: (0, 0)),                     # w1^T (lane padded)
        pl.BlockSpec((1, midpad), lambda bi, si: (0, 0)),                     # b1
        pl.BlockSpec((midpad, c3pad), lambda bi, si: (0, 0)),                 # stacked conv w^T
        pl.BlockSpec((1, c3pad), lambda bi, si: (0, 0)),                      # stacked conv bias
    ]
    out_spec = pl.BlockSpec((1, lpad, c3pad), lambda bi, si: (bi, 0, 0))

    full = pl.pallas_call(
        kernel,
        out_shape=jax.ShapeDtypeStruct((b, lpad, c3pad), jnp.float32),   # force f32 weights
        grid_spec=pltpu.PrefetchScalarGridSpec(
            num_scalar_prefetch=0,
            grid=(b, n_d),
            in_specs=in_specs,
            out_specs=out_spec,
            scratch_shapes=[
                pltpu.VMEM((lpad, c), jnp.float32),   # pooled-sequence slab (positions x channels)
                pltpu.VMEM((c, hw), jnp.float32),     # running sum over depth
            ],
        ),
        compiler_params=pltpu.CompilerParams(
            dimension_semantics=(batch_sem, "arbitrary"),
            vmem_limit_bytes=vmem_limit,
        ),
    )(x2, e_mat, w1_t, b1_row, w_dhw_t, b_dhw_row)

    depth_w = jnp.transpose(full[:, 0:d, 0:c], (0, 2, 1))              # (b, C, D)
    height_w = jnp.transpose(full[:, d:d + h, c:2 * c], (0, 2, 1))     # (b, C, H)
    width_w = jnp.transpose(full[:, d + h:l, 2 * c:c3], (0, 2, 1))     # (b, C, W)

    return (width_w.reshape(b, c, 1, 1, w),
            height_w.reshape(b, c, 1, h, 1),
            depth_w.reshape(b, c, d, 1, 1))


def reference(x, params):
    """Pure-JAX reference mirroring the PyTorch forward (for validation)."""
    hp = lax.Precision.HIGHEST
    b, c, d, h, w = x.shape
    depth_pool = jnp.mean(x, axis=(3, 4))     # (b,c,d)
    height_pool = jnp.mean(x, axis=(2, 4))    # (b,c,h)
    width_pool = jnp.mean(x, axis=(2, 3))     # (b,c,w)
    concat = jnp.concatenate([depth_pool, height_pool, width_pool], axis=-1)
    fused = jnp.einsum("mc,bcl->bml", params["w1"], concat, precision=hp) + params["b1"][None]
    mu = jnp.mean(fused, axis=-1, keepdims=True)
    var = jnp.mean((fused - mu) ** 2, axis=-1, keepdims=True)
    act = (fused - mu) / jnp.sqrt(var + EPS)
    act = jnp.where(act >= 0, act, NEG_SLOPE * act)
    d_seg, h_seg, w_seg = act[..., :d], act[..., d:d + h], act[..., d + h:]
    d_wt = jax.nn.sigmoid(jnp.einsum("cm,bml->bcl", params["wd"], d_seg, precision=hp)
                          + params["bd"][None])
    h_wt = jax.nn.sigmoid(jnp.einsum("cm,bml->bcl", params["wh"], h_seg, precision=hp)
                          + params["bh"][None])
    w_wt = jax.nn.sigmoid(jnp.einsum("cm,bml->bcl", params["ww"], w_seg, precision=hp)
                          + params["bw"][None])
    return (w_wt.reshape(b, c, 1, 1, w),
            h_wt.reshape(b, c, 1, h, 1),
            d_wt.reshape(b, c, d, 1, 1))


if __name__ == "__main__":
    # Small, deterministic configuration.
    B, C, D, H, W = 2, 32, 16, 16, 16
    REDUCTION = 4
    MID = C // REDUCTION

    key = jax.random.PRNGKey(0)
    kx, k1, k2, k3, k4, k5, k6, k7, k8 = jax.random.split(key, 9)

    x = jax.random.normal(kx, (B, C, D, H, W), dtype=jnp.float32)

    # Conv3d 1x1x1 weights stored as (out_ch, in_ch) matrices; biases as (out_ch, 1).
    params = {
        "w1": 0.2 * jax.random.normal(k1, (MID, C), dtype=jnp.float32),
        "b1": 0.1 * jax.random.normal(k2, (MID, 1), dtype=jnp.float32),
        "wd": 0.2 * jax.random.normal(k3, (C, MID), dtype=jnp.float32),
        "bd": 0.1 * jax.random.normal(k4, (C, 1), dtype=jnp.float32),
        "wh": 0.2 * jax.random.normal(k5, (C, MID), dtype=jnp.float32),
        "bh": 0.1 * jax.random.normal(k6, (C, 1), dtype=jnp.float32),
        "ww": 0.2 * jax.random.normal(k7, (C, MID), dtype=jnp.float32),
        "bw": 0.1 * jax.random.normal(k8, (C, 1), dtype=jnp.float32),
    }

    ATOL = RTOL = 2e-3  # sigmoid outputs in (0,1); covers MXU-vs-XLA matmul precision differences

    ref_w, ref_h, ref_d = reference(x, params)

    # default depth tiling (single tile at this small size)
    outs_default = coord_att_block(x, params)
    # forced depth tiling -> exercises the multi-step accumulation / pipelining path
    outs_tiled = coord_att_block(x, params, depth_tile=8)
    jax.block_until_ready((outs_default, outs_tiled))

    for out_w, out_h, out_d in (outs_default, outs_tiled):
        assert jnp.allclose(out_w, ref_w, atol=ATOL, rtol=RTOL)
        assert jnp.allclose(out_h, ref_h, atol=ATOL, rtol=RTOL)
        assert jnp.allclose(out_d, ref_d, atol=ATOL, rtol=RTOL)

    # ragged depth (D not divisible by the tile) -> exercises the masked partial last tile
    x_ragged = x[:, :, :12]
    refs_r = reference(x_ragged, params)
    outs_r = coord_att_block(x_ragged, params, depth_tile=8)
    jax.block_until_ready(outs_r)
    for o, r in zip(outs_r, refs_r):
        assert jnp.allclose(o, r, atol=ATOL, rtol=RTOL)

    print("KERNEL_OK")
</pallas_src>

<mosaic_0001>
module attributes {stable_mosaic.version = 11 : i64} {
  func.func @_coord_att_kernel(%arg0: i32, %arg1: i32, %arg2: memref<1x32x16x256xf32, #tpu.memory_space<vmem>>, %arg3: memref<256x32xf32, #tpu.memory_space<vmem>>, %arg4: memref<32x128xf32, #tpu.memory_space<vmem>>, %arg5: memref<1x128xf32, #tpu.memory_space<vmem>>, %arg6: memref<128x128xf32, #tpu.memory_space<vmem>>, %arg7: memref<1x128xf32, #tpu.memory_space<vmem>>, %arg8: memref<1x128x128xf32, #tpu.memory_space<vmem>>, %arg9: memref<128x32xf32, #tpu.memory_space<vmem>>, %arg10: memref<32x256xf32, #tpu.memory_space<vmem>>) attributes {dimension_semantics = [#tpu.dimension_semantics<parallel>, #tpu.dimension_semantics<arbitrary>], iteration_bounds = array<i64: 2, 1>, scalar_prefetch = 0 : i64, scratch_operands = 2 : i64, tpu.core_type = #tpu.core_type<tc>, window_params = [{transform_indices = @transform_0, window_bounds = array<i64: 1, 32, 16, 256>}, {pipeline_mode = #tpu.pipeline_mode<synchronous>, transform_indices = @transform_1, window_bounds = array<i64: 256, 32>}, {pipeline_mode = #tpu.pipeline_mode<synchronous>, transform_indices = @transform_2, window_bounds = array<i64: 32, 128>}, {pipeline_mode = #tpu.pipeline_mode<synchronous>, transform_indices = @transform_3, window_bounds = array<i64: 1, 128>}, {pipeline_mode = #tpu.pipeline_mode<synchronous>, transform_indices = @transform_4, window_bounds = array<i64: 128, 128>}, {pipeline_mode = #tpu.pipeline_mode<synchronous>, transform_indices = @transform_5, window_bounds = array<i64: 1, 128>}, {transform_indices = @transform_6, window_bounds = array<i64: 1, 128, 128>}]} {
    %c0_i32 = arith.constant 0 : i32
    %0 = arith.cmpi eq, %arg1, %c0_i32 : i32
    %1 = arith.extui %0 : i1 to i32
    %c0_i32_0 = arith.constant 0 : i32
    %2 = arith.cmpi ne, %1, %c0_i32_0 : i32
    scf.if %2 {
      %cst_13 = arith.constant 0.000000e+00 : f32
      %20 = vector.broadcast %cst_13 : f32 to vector<128x32xf32>
      %c0_14 = arith.constant 0 : index
      %c0_15 = arith.constant 0 : index
      %21 = vector.load %arg9[%c0_14, %c0_15] : memref<128x32xf32, #tpu.memory_space<vmem>>, vector<128x32xf32>
      tpu.vector_store %arg9[%c0_14, %c0_15], %20 {strides = array<i32>} : memref<128x32xf32, #tpu.memory_space<vmem>>, vector<128x32xf32>,
      %cst_16 = arith.constant 0.000000e+00 : f32
      %22 = vector.broadcast %cst_16 : f32 to vector<32x256xf32>
      %c0_17 = arith.constant 0 : index
      %c0_18 = arith.constant 0 : index
      %23 = vector.load %arg10[%c0_17, %c0_18] : memref<32x256xf32, #tpu.memory_space<vmem>>, vector<32x256xf32>
      tpu.vector_store %arg10[%c0_17, %c0_18], %22 {strides = array<i32>} : memref<32x256xf32, #tpu.memory_space<vmem>>, vector<32x256xf32>,
    } else {
    }
    %c0 = arith.constant 0 : index
    %c0_1 = arith.constant 0 : index
    %c0_2 = arith.constant 0 : index
    %c0_3 = arith.constant 0 : index
    %3 = vector.load %arg2[%c0, %c0_1, %c0_2, %c0_3] : memref<1x32x16x256xf32, #tpu.memory_space<vmem>>, vector<1x32x16x256xf32>
    %4 = vector.shape_cast %3 : vector<1x32x16x256xf32> to vector<32x16x256xf32>
    %cst = arith.constant dense<0.000000e+00> : vector<32x16xf32>
    %5 = vector.multi_reduction <add>, %4, %cst [2] : vector<32x16x256xf32> to vector<32x16xf32>
    %cst_4 = arith.constant 3.906250e-03 : f32
    %6 = vector.broadcast %cst_4 : f32 to vector<32x16xf32>
    %7 = arith.mulf %5, %6 : vector<32x16xf32>
    %c16_i32 = arith.constant 16 : i32
    %8 = arith.muli %arg1, %c16_i32 : i32
    %9 = tpu.assume_multiple %8, 16 : i32
    %10 = tpu.transpose %7, [1, 0] : vector<32x16xf32> -> vector<16x32xf32>
    %11 = arith.index_cast %9 : i32 to index
    %c0_5 = arith.constant 0 : index
    %12 = vector.load %arg9[%11, %c0_5] : memref<128x32xf32, #tpu.memory_space<vmem>>, vector<16x32xf32>
    tpu.vector_store %arg9[%11, %c0_5], %10 {strides = array<i32>} : memref<128x32xf32, #tpu.memory_space<vmem>>, vector<16x32xf32>,
    %c0_6 = arith.constant 0 : index
    %c0_7 = arith.constant 0 : index
    %13 = vector.load %arg10[%c0_6, %c0_7] : memref<32x256xf32, #tpu.memory_space<vmem>>, vector<32x256xf32>
    %cst_8 = arith.constant dense<0.000000e+00> : vector<32x256xf32>
    %14 = vector.multi_reduction <add>, %4, %cst_8 [1] : vector<32x16x256xf32> to vector<32x256xf32>
    %15 = arith.addf %13, %14 : vector<32x256xf32>
    %c0_9 = arith.constant 0 : index
    %c0_10 = arith.constant 0 : index
    %16 = vector.load %arg10[%c0_9, %c0_10] : memref<32x256xf32, #tpu.memory_space<vmem>>, vector<32x256xf32>
    tpu.vector_store %arg10[%c0_9, %c0_10], %15 {strides = array<i32>} : memref<32x256xf32, #tpu.memory_space<vmem>>, vector<32x256xf32>,
    %c0_i32_11 = arith.constant 0 : i32
    %17 = arith.cmpi eq, %arg1, %c0_i32_11 : i32
    %18 = arith.extui %17 : i1 to i32
    %c0_i32_12 = arith.constant 0 : i32
    %19 = arith.cmpi ne, %18, %c0_i32_12 : i32
    scf.if %19 {
      %c0_13 = arith.constant 0 : index
      %c0_14 = arith.constant 0 : index
      %20 = vector.load %arg10[%c0_13, %c0_14] : memref<32x256xf32, #tpu.memory_space<vmem>>, vector<32x256xf32>
      %c0_15 = arith.constant 0 : index
      %c0_16 = arith.constant 0 : index
      %21 = vector.load %arg3[%c0_15, %c0_16] : memref<256x32xf32, #tpu.memory_space<vmem>>, vector<256x32xf32>
      %cst_17 = arith.constant dense<0.000000e+00> : vector<32x32xf32>
      %22 = tpu.matmul %20, %21, %cst_17 {dimension_numbers = #tpu.dot_dimension_numbers<[1], [0], [0], [1], [0, 0, 1, 1], [], []>} : vector<32x256xf32>, vector<256x32xf32>, vector<32x32xf32> -> vector<32x32xf32>
      %23 = tpu.transpose %22, [1, 0] : vector<32x32xf32> -> vector<32x32xf32>
      %c16 = arith.constant 16 : index
      %c0_18 = arith.constant 0 : index
      %24 = vector.load %arg9[%c16, %c0_18] : memref<128x32xf32, #tpu.memory_space<vmem>>, vector<32x32xf32>
      tpu.vector_store %arg9[%c16, %c0_18], %23 {strides = array<i32>} : memref<128x32xf32, #tpu.memory_space<vmem>>, vector<32x32xf32>,
      %c0_19 = arith.constant 0 : index
      %c0_20 = arith.constant 0 : index
      %25 = vector.load %arg9[%c0_19, %c0_20] : memref<128x32xf32, #tpu.memory_space<vmem>>, vector<128x32xf32>
      %c0_21 = arith.constant 0 : index
      %c0_22 = arith.constant 0 : index
      %26 = vector.load %arg4[%c0_21, %c0_22] : memref<32x128xf32, #tpu.memory_space<vmem>>, vector<32x128xf32>
      %cst_23 = arith.constant dense<0.000000e+00> : vector<128x128xf32>
      %27 = tpu.matmul %25, %26, %cst_23 {dimension_numbers = #tpu.dot_dimension_numbers<[1], [0], [0], [1], [0, 0, 1, 1], [], []>} : vector<128x32xf32>, vector<32x128xf32>, vector<128x128xf32> -> vector<128x128xf32>
      %c0_24 = arith.constant 0 : index
      %c0_25 = arith.constant 0 : index
      %28 = vector.load %arg5[%c0_24, %c0_25] : memref<1x128xf32, #tpu.memory_space<vmem>>, vector<1x128xf32>
      %29 = vector.broadcast %28 : vector<1x128xf32> to vector<128x128xf32>
      %30 = arith.addf %27, %29 : vector<128x128xf32>
      %31 = tpu.iota {dimensions = array<i32: 0>} : vector<128x128xi32>
      %c48_i32 = arith.constant 48 : i32
      %32 = vector.broadcast %c48_i32 : i32 to vector<128x128xi32>
      %33 = arith.cmpi slt, %31, %32 : vector<128x128xi32>
      %cst_26 = arith.constant 0.000000e+00 : f32
      %34 = vector.broadcast %cst_26 : f32 to vector<128x128xf32>
      %35 = arith.select %33, %30, %34 : vector<128x128xi1>, vector<128x128xf32>
      %cst_27 = arith.constant dense<0.000000e+00> : vector<128xf32>
      %36 = vector.multi_reduction <add>, %35, %cst_27 [0] : vector<128x128xf32> to vector<128xf32>
      %37 = vector.shape_cast %36 : vector<128xf32> to vector<1x128xf32>
      %cst_28 = arith.constant 0.020833334 : f32
      %38 = vector.broadcast %cst_28 : f32 to vector<1x128xf32>
      %39 = arith.mulf %37, %38 : vector<1x128xf32>
      %40 = vector.broadcast %39 : vector<1x128xf32> to vector<128x128xf32>
      %41 = arith.subf %30, %40 : vector<128x128xf32>
      %42 = arith.mulf %41, %41 : vector<128x128xf32>
      %cst_29 = arith.constant 0.000000e+00 : f32
      %43 = vector.broadcast %cst_29 : f32 to vector<128x128xf32>
      %44 = arith.select %33, %42, %43 : vector<128x128xi1>, vector<128x128xf32>
      %cst_30 = arith.constant dense<0.000000e+00> : vector<128xf32>
      %45 = vector.multi_reduction <add>, %44, %cst_30 [0] : vector<128x128xf32> to vector<128xf32>
      %46 = vector.shape_cast %45 : vector<128xf32> to vector<1x128xf32>
      %cst_31 = arith.constant 0.020833334 : f32
      %47 = vector.broadcast %cst_31 : f32 to vector<1x128xf32>
      %48 = arith.mulf %46, %47 : vector<1x128xf32>
      %cst_32 = arith.constant 9.99999974E-6 : f32
      %49 = vector.broadcast %cst_32 : f32 to vector<1x128xf32>
      %50 = arith.addf %48, %49 : vector<1x128xf32>
      %51 = math.rsqrt %50 : vector<1x128xf32>
      %52 = vector.broadcast %51 : vector<1x128xf32> to vector<128x128xf32>
      %53 = arith.mulf %41, %52 : vector<128x128xf32>
      %cst_33 = arith.constant 0.000000e+00 : f32
      %54 = vector.broadcast %cst_33 : f32 to vector<128x128xf32>
      %55 = arith.cmpf oge, %53, %54 : vector<128x128xf32>
      %cst_34 = arith.constant 0.00999999977 : f32
      %56 = vector.broadcast %cst_34 : f32 to vector<128x128xf32>
      %57 = arith.mulf %56, %53 : vector<128x128xf32>
      %58 = arith.select %55, %53, %57 : vector<128x128xi1>, vector<128x128xf32>
      %c0_35 = arith.constant 0 : index
      %c0_36 = arith.constant 0 : index
      %59 = vector.load %arg6[%c0_35, %c0_36] : memref<128x128xf32, #tpu.memory_space<vmem>>, vector<128x128xf32>
      %cst_37 = arith.constant dense<0.000000e+00> : vector<128x128xf32>
      %60 = tpu.matmul %58, %59, %cst_37 {dimension_numbers = #tpu.dot_dimension_numbers<[1], [0], [0], [1], [0, 0, 1, 1], [], []>} : vector<128x128xf32>, vector<128x128xf32>, vector<128x128xf32> -> vector<128x128xf32>
      %c0_38 = arith.constant 0 : index
      %c0_39 = arith.constant 0 : index
      %61 = vector.load %arg7[%c0_38, %c0_39] : memref<1x128xf32, #tpu.memory_space<vmem>>, vector<1x128xf32>
      %62 = vector.broadcast %61 : vector<1x128xf32> to vector<128x128xf32>
      %63 = arith.addf %60, %62 : vector<128x128xf32>
      %64 = arith.negf %63 : vector<128x128xf32>
      %65 = math.exp %64 : vector<128x128xf32>
      %cst_40 = arith.constant 1.000000e+00 : f32
      %66 = vector.broadcast %cst_40 : f32 to vector<128x128xf32>
      %67 = arith.addf %66, %65 : vector<128x128xf32>
      %68 = arith.divf %66, %67 : vector<128x128xf32>
      %c0_41 = arith.constant 0 : index
      %c0_42 = arith.constant 0 : index
      %c0_43 = arith.constant 0 : index
      %69 = vector.load %arg8[%c0_41, %c0_42, %c0_43] : memref<1x128x128xf32, #tpu.memory_space<vmem>>, vector<1x128x128xf32>
      %70 = vector.shape_cast %69 : vector<1x128x128xf32> to vector<128x128xf32>
      %71 = vector.shape_cast %68 : vector<128x128xf32> to vector<1x128x128xf32>
      tpu.vector_store %arg8[%c0_41, %c0_42, %c0_43], %71 {strides = array<i32>} : memref<1x128x128xf32, #tpu.memory_space<vmem>>, vector<1x128x128xf32>,
    } else {
    }
    return
  }
  func.func @transform_0(%arg0: i32, %arg1: i32) -> (i32, i32, i32, i32) {
    %c0_i32 = arith.constant 0 : i32
    %c0_i32_0 = arith.constant 0 : i32
    %c0_i32_1 = arith.constant 0 : i32
    return %arg0, %c0_i32, %arg1, %c0_i32_0 : i32, i32, i32, i32
  }
  func.func @transform_1(%arg0: i32, %arg1: i32) -> (i32, i32) {
    %c0_i32 = arith.constant 0 : i32
    %c0_i32_0 = arith.constant 0 : i32
    %c0_i32_1 = arith.constant 0 : i32
    return %c0_i32, %c0_i32_0 : i32, i32
  }
  func.func @transform_2(%arg0: i32, %arg1: i32) -> (i32, i32) {
    %c0_i32 = arith.constant 0 : i32
    %c0_i32_0 = arith.constant 0 : i32
    %c0_i32_1 = arith.constant 0 : i32
    return %c0_i32, %c0_i32_0 : i32, i32
  }
  func.func @transform_3(%arg0: i32, %arg1: i32) -> (i32, i32) {
    %c0_i32 = arith.constant 0 : i32
    %c0_i32_0 = arith.constant 0 : i32
    %c0_i32_1 = arith.constant 0 : i32
    return %c0_i32, %c0_i32_0 : i32, i32
  }
  func.func @transform_4(%arg0: i32, %arg1: i32) -> (i32, i32) {
    %c0_i32 = arith.constant 0 : i32
    %c0_i32_0 = arith.constant 0 : i32
    %c0_i32_1 = arith.constant 0 : i32
    return %c0_i32, %c0_i32_0 : i32, i32
  }
  func.func @transform_5(%arg0: i32, %arg1: i32) -> (i32, i32) {
    %c0_i32 = arith.constant 0 : i32
    %c0_i32_0 = arith.constant 0 : i32
    %c0_i32_1 = arith.constant 0 : i32
    return %c0_i32, %c0_i32_0 : i32, i32
  }
  func.func @transform_6(%arg0: i32, %arg1: i32) -> (i32, i32, i32) {
    %c0_i32 = arith.constant 0 : i32
    %c0_i32_0 = arith.constant 0 : i32
    %c0_i32_1 = arith.constant 0 : i32
    return %arg0, %c0_i32, %c0_i32_0 : i32, i32, i32
  }
}

</mosaic_0001>

<llo_original>
// kernel: tpu_custom_call.1
$region0: #{tpu_custom_call.1}
  #allocation0 [shape = 'u32[]', space=smem, size = 0x4, offset = 0x4, fixed_abs, tag = 'smem constant byte address 0x4 - core index']
  #allocation1 [shape = 'u32[144,128]{1,0:T(1,128)}', space=vmem, size = 0x12000, scoped, tag = 'internal scratch']
  #allocation2 [shape = 'f32[128,32]{1,0:T(8,128)}', space=vmem, size = 0x10000, scoped, tag = 'scratch operand']
  #allocation3 [shape = 'f32[32,256]{1,0:T(8,128)}', space=vmem, size = 0x8000, scoped, tag = 'scratch operand']
  %s0 = inlined_call_operand.hbm [shape: f32[2,32,16,256], index: 0, kind: input, shape index: {}]
  %s1 = inlined_call_operand.vmem [shape: f32[256,32], index: 1, kind: input, shape index: {}]
  %s2 = inlined_call_operand.vmem [shape: f32[32,128], index: 2, kind: input, shape index: {}]
  %s3 = inlined_call_operand.vmem [shape: f32[1,128], index: 3, kind: input, shape index: {}]
  %s4 = inlined_call_operand.vmem [shape: f32[128,128], index: 4, kind: input, shape index: {}]
  %s5 = inlined_call_operand.vmem [shape: f32[1,128], index: 5, kind: input, shape index: {}]
  %s6 = inlined_call_operand.hbm [shape: f32[2,128,128], index: 6, kind: output, shape index: {}]
  %s7 = sld [smem:[#allocation0]]
  $region69: #{tpu_custom_call.1} parent=0
    _
  %s9 = ssub.s32 1, %s7
  %s10 = scalar_select 0, %s9, %s7
  $region1: #{tpu_custom_call.1} parent=0
    #allocation4 [shape = 'u8[1048576]{0}', space=vmem, size = 0x100000, scoped, tag = 'input window, operand 0']
    #allocation5 [shape = 's32[2]{0}', space=sflag, size = 0x8, scoped, tag = 'scoped memory for tpu_custom_call.1']
    #allocation6 [shape = 's32[2]{0}', space=sflag, size = 0x8, scoped, tag = 'scoped memory for tpu_custom_call.1']
    #allocation7 [shape = 'u8[131072]{0}', space=vmem, size = 0x20000, scoped, tag = 'output window, operand 0']
    %11 = vsyncpa [#allocation5], 0
    %s12 = scalar_lea.sflag [#allocation5], 1
    %13 = vsyncpa %s12, 0
    %14 = vsyncpa [#allocation6], 0
    %s15 = scalar_lea.sflag [#allocation6], 1
    %16 = vsyncpa %s15, 0
    loop: start=0, step=1, limit=4
    $region2: #{tpu_custom_call.1} parent=1 // loop_pre_header
      _
    $region3: #{tpu_custom_call.1} parent=1 // loop_header
      %s18 = sphi 0, %s22
      %p19 = scmp.ge.s32.totalorder %s18, 4
      %s25 = sphi 0, %s37
      %s26 = sphi 0, %s33
      %s27 = sphi 0, %s25
      %s28 = sphi 0, %s26
      %s29 = sphi 0, %s27
      %s30 = sphi 0, %s28
      %s42 = sphi 0, %s44
      %s45 = sphi 0, %s42
      %s46 = sphi 0, %s45
      %s62 = sphi 0, %s46
      %s66 = sphi 0, %s66
      %s68 = sphi 0, %s66
      %s69 = sphi 0, %s68
      %s83 = sphi 0, %s69
      %s87 = sphi 0, %s87
      %s89 = sphi 0, %s87
      %s90 = sphi 0, %s89
      %s104 = sphi 0, %s90
      %s108 = sphi 0, %s108
      %s110 = sphi 0, %s108
      %s111 = sphi 0, %s110
      %s125 = sphi 0, %s111
      %s129 = sphi 0, %s129
      %s131 = sphi 0, %s129
      %s132 = sphi 0, %s131
      %s146 = sphi 0, %s132
      %s150 = sphi 0, %s150
      %s152 = sphi 0, %s150
      %s153 = sphi 0, %s152
      %s167 = sphi 0, %s153
      %s173 = sphi 0, %s175
      %s176 = sphi 0, %s173
      %s177 = sphi 0, %s176
      %s193 = sphi 0, %s177
    $region4: #{tpu_custom_call.1} parent=1 // loop_header_branch
      %21 = sbr.rel (%p19) target = $region8
    $region5: #{tpu_custom_call.1} parent=1 // loop_body
      %s23 = ssub.s32 %s18, 1
      %s24 = ssub.s32 %s18, 2
      %s31 = sadd.s32 1, %s26
      %p32 = scmp.ge.s32.totalorder %s31, 1
      %s33 = scalar_select %p32, 0, %s31
      %s34 = sadd.s32 1, %s25
      %s35 = scalar_select %p32, %s34, %s25
      %p36 = scmp.ge.s32.totalorder %s35, 2
      %s37 = scalar_select %p36, 0, %s35
      %s38 = ssub.s32 %s25, %s37
      %s39 = ssub.s32 %s26, %s33
      %s40 = sor.u32 %s38, %s39
      %p41 = scmp.eq.s32.totalorder %s40, 0
      %s43 = sadd.s32 %s42, 1
      %s44 = scalar_select %p41, %s42, %s43
      %p47 = pneg %p41
      %p48 = scmp.eq.s32.totalorder %s18, 1
      %p49 = por %p47, %p48
      %p50 = scmp.ne.s32.totalorder %s42, %s45
      %p51 = scmp.eq.s32.totalorder %s18, 0
      %p52 = por %p50, %p51
      %p53 = scmp.ne.s32.totalorder %s42, %s45
      %p54 = scmp.eq.s32.totalorder %s23, 1
      %p55 = por %p53, %p54
      %p56 = scmp.ne.s32.totalorder %s45, %s46
      %p57 = scmp.eq.s32.totalorder %s23, 0
      %p58 = por %p56, %p57
      %p59 = scmp.ne.s32.totalorder %s45, %s46
      %p60 = scmp.eq.s32.totalorder %s24, 1
      %p61 = por %p59, %p60
      %p63 = scmp.ne.s32.totalorder %s46, %s62
      %p64 = scmp.eq.s32.totalorder %s24, 0
      %p65 = por %p63, %p64
      %s67 = sadd.s32 %s66, 1
      %p70 = scmp.eq.s32.totalorder %s18, 1
      %p71 = scmp.ne.s32.totalorder %s66, %s68
      %p72 = scmp.eq.s32.totalorder %s18, 0
      %p73 = por %p71, %p72
      %p74 = scmp.ne.s32.totalorder %s66, %s68
      %p75 = scmp.eq.s32.totalorder %s23, 1
      %p76 = por %p74, %p75
      %p77 = scmp.ne.s32.totalorder %s68, %s69
      %p78 = scmp.eq.s32.totalorder %s23, 0
      %p79 = por %p77, %p78
      %p80 = scmp.ne.s32.totalorder %s68, %s69
      %p81 = scmp.eq.s32.totalorder %s24, 1
      %p82 = por %p80, %p81
      %p84 = scmp.ne.s32.totalorder %s69, %s83
      %p85 = scmp.eq.s32.totalorder %s24, 0
      %p86 = por %p84, %p85
      %s88 = sadd.s32 %s87, 1
      %p91 = scmp.eq.s32.totalorder %s18, 1
      %p92 = scmp.ne.s32.totalorder %s87, %s89
      %p93 = scmp.eq.s32.totalorder %s18, 0
      %p94 = por %p92, %p93
      %p95 = scmp.ne.s32.totalorder %s87, %s89
      %p96 = scmp.eq.s32.totalorder %s23, 1
      %p97 = por %p95, %p96
      %p98 = scmp.ne.s32.totalorder %s89, %s90
      %p99 = scmp.eq.s32.totalorder %s23, 0
      %p100 = por %p98, %p99
      %p101 = scmp.ne.s32.totalorder %s89, %s90
      %p102 = scmp.eq.s32.totalorder %s24, 1
      %p103 = por %p101, %p102
      %p105 = scmp.ne.s32.totalorder %s90, %s104
      %p106 = scmp.eq.s32.totalorder %s24, 0
      %p107 = por %p105, %p106
      %s109 = sadd.s32 %s108, 1
      %p112 = scmp.eq.s32.totalorder %s18, 1
      %p113 = scmp.ne.s32.totalorder %s108, %s110
      %p114 = scmp.eq.s32.totalorder %s18, 0
      %p115 = por %p113, %p114
      %p116 = scmp.ne.s32.totalorder %s108, %s110
      %p117 = scmp.eq.s32.totalorder %s23, 1
      %p118 = por %p116, %p117
      %p119 = scmp.ne.s32.totalorder %s110, %s111
      %p120 = scmp.eq.s32.totalorder %s23, 0
      %p121 = por %p119, %p120
      %p122 = scmp.ne.s32.totalorder %s110, %s111
      %p123 = scmp.eq.s32.totalorder %s24, 1
      %p124 = por %p122, %p123
      %p126 = scmp.ne.s32.totalorder %s111, %s125
      %p127 = scmp.eq.s32.totalorder %s24, 0
      %p128 = por %p126, %p127
      %s130 = sadd.s32 %s129, 1
      %p133 = scmp.eq.s32.totalorder %s18, 1
      %p134 = scmp.ne.s32.totalorder %s129, %s131
      %p135 = scmp.eq.s32.totalorder %s18, 0
      %p136 = por %p134, %p135
      %p137 = scmp.ne.s32.totalorder %s129, %s131
      %p138 = scmp.eq.s32.totalorder %s23, 1
      %p139 = por %p137, %p138
      %p140 = scmp.ne.s32.totalorder %s131, %s132
      %p141 = scmp.eq.s32.totalorder %s23, 0
      %p142 = por %p140, %p141
      %p143 = scmp.ne.s32.totalorder %s131, %s132
      %p144 = scmp.eq.s32.totalorder %s24, 1
      %p145 = por %p143, %p144
      %p147 = scmp.ne.s32.totalorder %s132, %s146
      %p148 = scmp.eq.s32.totalorder %s24, 0
      %p149 = por %p147, %p148
      %s151 = sadd.s32 %s150, 1
      %p154 = scmp.eq.s32.totalorder %s18, 1
      %p155 = scmp.ne.s32.totalorder %s150, %s152
      %p156 = scmp.eq.s32.totalorder %s18, 0
      %p157 = por %p155, %p156
      %p158 = scmp.ne.s32.totalorder %s150, %s152
      %p159 = scmp.eq.s32.totalorder %s23, 1
      %p160 = por %p158, %p159
      %p161 = scmp.ne.s32.totalorder %s152, %s153
      %p162 = scmp.eq.s32.totalorder %s23, 0
      %p163 = por %p161, %p162
      %p164 = scmp.ne.s32.totalorder %s152, %s153
      %p165 = scmp.eq.s32.totalorder %s24, 1
      %p166 = por %p164, %p165
      %p168 = scmp.ne.s32.totalorder %s153, %s167
      %p169 = scmp.eq.s32.totalorder %s24, 0
      %p170 = por %p168, %p169
      %s171 = ssub.s32 %s25, %s37
      %p172 = scmp.eq.s32.totalorder %s171, 0
      %s174 = sadd.s32 %s173, 1
      %s175 = scalar_select %p172, %s173, %s174
      %p178 = pneg %p172
      %p179 = scmp.eq.s32.totalorder %s18, 1
      %p180 = por %p178, %p179
      %p181 = scmp.ne.s32.totalorder %s173, %s176
      %p182 = scmp.eq.s32.totalorder %s18, 0
      %p183 = por %p181, %p182
      %p184 = scmp.ne.s32.totalorder %s173, %s176
      %p185 = scmp.eq.s32.totalorder %s23, 1
      %p186 = por %p184, %p185
      %p187 = scmp.ne.s32.totalorder %s176, %s177
      %p188 = scmp.eq.s32.totalorder %s23, 0
      %p189 = por %p187, %p188
      %p190 = scmp.ne.s32.totalorder %s176, %s177
      %p191 = scmp.eq.s32.totalorder %s24, 1
      %p192 = por %p190, %p191
      %p194 = scmp.ne.s32.totalorder %s177, %s193
      %p195 = scmp.eq.s32.totalorder %s24, 0
      %p196 = por %p194, %p195
      %p197 = scmp.le.s32.totalorder 1, %s18
      %p198 = scmp.lt.s32.totalorder %s18, 3
      %p199 = pnand %p197, %p198
      %p200 = pneg %p199
      // Predicated region
      $region9: #{tpu_custom_call.1} parent=5 // pred_check
        _
      $region10: #{tpu_custom_call.1} parent=5 // pred_check_branch
        %202 = sbr.rel (%p199) target = $region12
      $region11: #{tpu_custom_call.1} parent=5 // pred_region
        %s203 = ssub.s32 %s18, 1
        // Predicated region
        $region13: #{tpu_custom_call.1} parent=11 // pred_check
          %p204 = pneg %p79
        $region14: #{tpu_custom_call.1} parent=11 // pred_check_branch
          %206 = sbr.rel (%p204) target = $region16
        $region15: #{tpu_custom_call.1} parent=11 // pred_region
          _
        $region16: #{tpu_custom_call.1} parent=11 // pred_fallthru
          _
        // Predicated region
        $region17: #{tpu_custom_call.1} parent=11 // pred_check
          %p207 = pneg %p100
        $region18: #{tpu_custom_call.1} parent=11 // pred_check_branch
          %209 = sbr.rel (%p207) target = $region20
        $region19: #{tpu_custom_call.1} parent=11 // pred_region
          _
        $region20: #{tpu_custom_call.1} parent=11 // pred_fallthru
          _
        // Predicated region
        $region21: #{tpu_custom_call.1} parent=11 // pred_check
          %p210 = pneg %p121
        $region22: #{tpu_custom_call.1} parent=11 // pred_check_branch
          %212 = sbr.rel (%p210) target = $region24
        $region23: #{tpu_custom_call.1} parent=11 // pred_region
          _
        $region24: #{tpu_custom_call.1} parent=11 // pred_fallthru
          _
        // Predicated region
        $region25: #{tpu_custom_call.1} parent=11 // pred_check
          %p213 = pneg %p142
        $region26: #{tpu_custom_call.1} parent=11 // pred_check_branch
          %215 = sbr.rel (%p213) target = $region28
        $region27: #{tpu_custom_call.1} parent=11 // pred_region
          _
        $region28: #{tpu_custom_call.1} parent=11 // pred_fallthru
          _
        // Predicated region
        $region29: #{tpu_custom_call.1} parent=11 // pred_check
          %p216 = pneg %p163
        $region30: #{tpu_custom_call.1} parent=11 // pred_check_branch
          %218 = sbr.rel (%p216) target = $region32
        $region31: #{tpu_custom_call.1} parent=11 // pred_region
          _
        $region32: #{tpu_custom_call.1} parent=11 // pred_fallthru
          _
      $region12: #{tpu_custom_call.1} parent=5 // pred_fallthru
        _
      %p219 = scmp.lt.s32.totalorder %s18, 2
      // Predicated region
      $region33: #{tpu_custom_call.1} parent=5 // pred_check
        %p220 = pneg %p219
      $region34: #{tpu_custom_call.1} parent=5 // pred_check_branch
        %222 = sbr.rel (%p220) target = $region36
      $region35: #{tpu_custom_call.1} parent=5 // pred_region
        // Predicated region
        $region37: #{tpu_custom_call.1} parent=35 // pred_check
          %p223 = pneg %p52
        $region38: #{tpu_custom_call.1} parent=35 // pred_check_branch
          %225 = sbr.rel (%p223) target = $region40
        $region39: #{tpu_custom_call.1} parent=35 // pred_region
          %s226 = sand.u32 %s42, 1
          %s227 = scalar_lea.sflag [#allocation5], %s226
          %s228 = sand.u32 %s42, 1
          %s229 = smul.addr %s228, 1024
          %s230 = scalar_lea.vmem [#allocation4], %s229
          %s231 = smul.u32 2, %s26
          %s233 = ssub.s32 16384, 16384
          %234 = vsyncadd %s227, %s233
          %s235 = smul.addr %s231, 2
          %s236 = smul.addr %s25, 128
          %s237 = sadd.s32 %s235, %s236
          %s238 = smul.addr %s237, 128
          %s239 = scalar_lea.hbm %s0, %s238
          %s240 = sshll.u32 %s230, 4
          %s241 = int_to_ptr.vmem [resolvable:$true] %s240
          %246 = dma.hbm_to_vmem [thread:$0]  %s239, 16384, %s241, %s227, 256, 256, 16
        $region40: #{tpu_custom_call.1} parent=35 // pred_fallthru
          _
      $region36: #{tpu_custom_call.1} parent=5 // pred_fallthru
        _
      %p247 = scmp.le.s32.totalorder 1, %s18
      %p248 = scmp.lt.s32.totalorder %s18, 3
      %p249 = pnand %p247, %p248
      %p250 = pneg %p249
      // Predicated region
      $region41: #{tpu_custom_call.1} parent=5 // pred_check
        _
      $region42: #{tpu_custom_call.1} parent=5 // pred_check_branch
        %252 = sbr.rel (%p249) target = $region44
      $region43: #{tpu_custom_call.1} parent=5 // pred_region
        %s253 = ssub.s32 %s18, 1
        %s254 = sand.u32 %s45, 1
        %s255 = scalar_lea.sflag [#allocation5], %s254
        %s256 = sand.u32 %s45, 1
        %s257 = smul.addr %s256, 1024
        %s258 = scalar_lea.vmem [#allocation4], %s257
        // Predicated region
        $region45: #{tpu_custom_call.1} parent=43 // pred_check
          %p259 = pneg %p58
        $region46: #{tpu_custom_call.1} parent=43 // pred_check_branch
          %261 = sbr.rel (%p259) target = $region48
        $region47: #{tpu_custom_call.1} parent=43 // pred_region
          %262 = dma.done %s255, 16384
        $region48: #{tpu_custom_call.1} parent=43 // pred_fallthru
          _
        %s263 = sand.u32 %s45, 1
        %s264 = scalar_lea.sflag [#allocation5], %s263
        %s265 = sand.u32 %s45, 1
        %s266 = smul.addr %s265, 1024
        %s267 = scalar_lea.vmem [#allocation4], %s266
        %p268 = pneg %p58
        %p269 = pneg %p55
        %p270 = pneg %p79
        %p271 = pneg %p76
        %p272 = pneg %p100
        %p273 = pneg %p97
        %p274 = pneg %p121
        %p275 = pneg %p118
        %p276 = pneg %p142
        %p277 = pneg %p139
        %p278 = pneg %p163
        %p279 = pneg %p160
        %p280 = pneg %p189
        %p281 = pneg %p186
        %s282 = sand.u32 %s176, 1
        %s283 = scalar_lea.sflag [#allocation6], %s282
        %s284 = sand.u32 %s176, 1
        %s285 = smul.addr %s284, 128
        %s286 = scalar_lea.vmem [#allocation7], %s285
        %s287 = smul.u32 2, %s28
        %p288 = scmp.eq.s32.totalorder %s28, 0
        // Predicated region
        $region49: #{tpu_custom_call.1} parent=43 // pred_check
          %p289 = pneg %p288
        $region50: #{tpu_custom_call.1} parent=43 // pred_check_branch
          %291 = sbr.rel (%p289) target = $region52
        $region51: #{tpu_custom_call.1} parent=43 // pred_region
          %vm292 = vcmask 261120
          %293 = vst.msk [vmem:[#allocation2] sm:$0xff] %vm292, 0.0
          %294 = vst.msk [vmem:[#allocation2 + $0x8] sm:$0xff] %vm292, 0.0
          %295 = vst.msk [vmem:[#allocation2 + $0x10] sm:$0xff] %vm292, 0.0
          %296 = vst.msk [vmem:[#allocation2 + $0x18] sm:$0xff] %vm292, 0.0
          %297 = vst.msk [vmem:[#allocation2 + $0x20] sm:$0xff] %vm292, 0.0
          %298 = vst.msk [vmem:[#allocation2 + $0x28] sm:$0xff] %vm292, 0.0
          %299 = vst.msk [vmem:[#allocation2 + $0x30] sm:$0xff] %vm292, 0.0
          %300 = vst.msk [vmem:[#allocation2 + $0x38] sm:$0xff] %vm292, 0.0
          %301 = vst.msk [vmem:[#allocation2 + $0x40] sm:$0xff] %vm292, 0.0
          %302 = vst.msk [vmem:[#allocation2 + $0x48] sm:$0xff] %vm292, 0.0
          %303 = vst.msk [vmem:[#allocation2 + $0x50] sm:$0xff] %vm292, 0.0
          %304 = vst.msk [vmem:[#allocation2 + $0x58] sm:$0xff] %vm292, 0.0
          %305 = vst.msk [vmem:[#allocation2 + $0x60] sm:$0xff] %vm292, 0.0
          %306 = vst.msk [vmem:[#allocation2 + $0x68] sm:$0xff] %vm292, 0.0
          %307 = vst.msk [vmem:[#allocation2 + $0x70] sm:$0xff] %vm292, 0.0
          %308 = vst.msk [vmem:[#allocation2 + $0x78] sm:$0xff] %vm292, 0.0
          %309 = vst [vmem:[#allocation3] sm:$0xff] 0.0
          %310 = vst [vmem:[#allocation3 + $0x8] sm:$0xff] 0.0
          %311 = vst [vmem:[#allocation3 + $0x10] sm:$0xff] 0.0
          %312 = vst [vmem:[#allocation3 + $0x18] sm:$0xff] 0.0
          %313 = vst [vmem:[#allocation3 + $0x20] sm:$0xff] 0.0
          %314 = vst [vmem:[#allocation3 + $0x28] sm:$0xff] 0.0
          %315 = vst [vmem:[#allocation3 + $0x30] sm:$0xff] 0.0
          %316 = vst [vmem:[#allocation3 + $0x38] sm:$0xff] 0.0
        $region52: #{tpu_custom_call.1} parent=43 // pred_fallthru
          _
        %v317 = vld [vmem:[%s258] sm:$0xff]
        %v318 = vld [vmem:[%s258 + $0x8] sm:$0xff]
        %v319 = vld [vmem:[%s258 + $0x10] sm:$0xff]
        %v320 = vld [vmem:[%s258 + $0x18] sm:$0xff]
        %v321 = vld [vmem:[%s258 + $0x20] sm:$0xff]
        %v322 = vld [vmem:[%s258 + $0x28] sm:$0xff]
        %v323 = vld [vmem:[%s258 + $0x30] sm:$0xff]
        %v324 = vld [vmem:[%s258 + $0x38] sm:$0xff]
        %v325 = vld [vmem:[%s258 + $0x40] sm:$0xff]
        %v326 = vld [vmem:[%s258 + $0x48] sm:$0xff]
        %v327 = vld [vmem:[%s258 + $0x50] sm:$0xff]
        %v328 = vld [vmem:[%s258 + $0x58] sm:$0xff]
        %v329 = vld [vmem:[%s258 + $0x60] sm:$0xff]
        %v330 = vld [vmem:[%s258 + $0x68] sm:$0xff]
        %v331 = vld [vmem:[%s258 + $0x70] sm:$0xff]
        %v332 = vld [vmem:[%s258 + $0x78] sm:$0xff]
        %v333 = vld [vmem:[%s258 + $0x80] sm:$0xff]
        %v334 = vld [vmem:[%s258 + $0x88] sm:$0xff]
        %v335 = vld [vmem:[%s258 + $0x90] sm:$0xff]
        %v336 = vld [vmem:[%s258 + $0x98] sm:$0xff]
        %v337 = vld [vmem:[%s258 + $0xa0] sm:$0xff]
        %v338 = vld [vmem:[%s258 + $0xa8] sm:$0xff]
        %v339 = vld [vmem:[%s258 + $0xb0] sm:$0xff]
        %v340 = vld [vmem:[%s258 + $0xb8] sm:$0xff]
        %v341 = vld [vmem:[%s258 + $0xc0] sm:$0xff]
        %v342 = vld [vmem:[%s258 + $0xc8] sm:$0xff]
        %v343 = vld [vmem:[%s258 + $0xd0] sm:$0xff]
        %v344 = vld [vmem:[%s258 + $0xd8] sm:$0xff]
        %v345 = vld [vmem:[%s258 + $0xe0] sm:$0xff]
        %v346 = vld [vmem:[%s258 + $0xe8] sm:$0xff]
        %v347 = vld [vmem:[%s258 + $0xf0] sm:$0xff]
        %v348 = vld [vmem:[%s258 + $0xf8] sm:$0xff]
        %v349 = vld [vmem:[%s258 + $0x100] sm:$0xff]
        %v350 = vld [vmem:[%s258 + $0x108] sm:$0xff]
        %v351 = vld [vmem:[%s258 + $0x110] sm:$0xff]
        %v352 = vld [vmem:[%s258 + $0x118] sm:$0xff]
        %v353 = vld [vmem:[%s258 + $0x120] sm:$0xff]
        %v354 = vld [vmem:[%s258 + $0x128] sm:$0xff]
        %v355 = vld [vmem:[%s258 + $0x130] sm:$0xff]
        %v356 = vld [vmem:[%s258 + $0x138] sm:$0xff]
        %v357 = vld [vmem:[%s258 + $0x140] sm:$0xff]
        %v358 = vld [vmem:[%s258 + $0x148] sm:$0xff]
        %v359 = vld [vmem:[%s258 + $0x150] sm:$0xff]
        %v360 = vld [vmem:[%s258 + $0x158] sm:$0xff]
        %v361 = vld [vmem:[%s258 + $0x160] sm:$0xff]
        %v362 = vld [vmem:[%s258 + $0x168] sm:$0xff]
        %v363 = vld [vmem:[%s258 + $0x170] sm:$0xff]
        %v364 = vld [vmem:[%s258 + $0x178] sm:$0xff]
        %v365 = vld [vmem:[%s258 + $0x180] sm:$0xff]
        %v366 = vld [vmem:[%s258 + $0x188] sm:$0xff]
        %v367 = vld [vmem:[%s258 + $0x190] sm:$0xff]
        %v368 = vld [vmem:[%s258 + $0x198] sm:$0xff]
        %v369 = vld [vmem:[%s258 + $0x1a0] sm:$0xff]
        %v370 = vld [vmem:[%s258 + $0x1a8] sm:$0xff]
        %v371 = vld [vmem:[%s258 + $0x1b0] sm:$0xff]
        %v372 = vld [vmem:[%s258 + $0x1b8] sm:$0xff]
        %v373 = vld [vmem:[%s258 + $0x1c0] sm:$0xff]
        %v374 = vld [vmem:[%s258 + $0x1c8] sm:$0xff]
        %v375 = vld [vmem:[%s258 + $0x1d0] sm:$0xff]
        %v376 = vld [vmem:[%s258 + $0x1d8] sm:$0xff]
        %v377 = vld [vmem:[%s258 + $0x1e0] sm:$0xff]
        %v378 = vld [vmem:[%s258 + $0x1e8] sm:$0xff]
        %v379 = vld [vmem:[%s258 + $0x1f0] sm:$0xff]
        %v380 = vld [vmem:[%s258 + $0x1f8] sm:$0xff]
        %v381 = vld [vmem:[%s258 + $0x200] sm:$0xff]
        %v382 = vld [vmem:[%s258 + $0x208] sm:$0xff]
        %v383 = vld [vmem:[%s258 + $0x210] sm:$0xff]
        %v384 = vld [vmem:[%s258 + $0x218] sm:$0xff]
        %v385 = vld [vmem:[%s258 + $0x220] sm:$0xff]
        %v386 = vld [vmem:[%s258 + $0x228] sm:$0xff]
        %v387 = vld [vmem:[%s258 + $0x230] sm:$0xff]
        %v388 = vld [vmem:[%s258 + $0x238] sm:$0xff]
        %v389 = vld [vmem:[%s258 + $0x240] sm:$0xff]
        %v390 = vld [vmem:[%s258 + $0x248] sm:$0xff]
        %v391 = vld [vmem:[%s258 + $0x250] sm:$0xff]
        %v392 = vld [vmem:[%s258 + $0x258] sm:$0xff]
        %v393 = vld [vmem:[%s258 + $0x260] sm:$0xff]
        %v394 = vld [vmem:[%s258 + $0x268] sm:$0xff]
        %v395 = vld [vmem:[%s258 + $0x270] sm:$0xff]
        %v396 = vld [vmem:[%s258 + $0x278] sm:$0xff]
        %v397 = vld [vmem:[%s258 + $0x280] sm:$0xff]
        %v398 = vld [vmem:[%s258 + $0x288] sm:$0xff]
        %v399 = vld [vmem:[%s258 + $0x290] sm:$0xff]
        %v400 = vld [vmem:[%s258 + $0x298] sm:$0xff]
        %v401 = vld [vmem:[%s258 + $0x2a0] sm:$0xff]
        %v402 = vld [vmem:[%s258 + $0x2a8] sm:$0xff]
        %v403 = vld [vmem:[%s258 + $0x2b0] sm:$0xff]
        %v404 = vld [vmem:[%s258 + $0x2b8] sm:$0xff]
        %v405 = vld [vmem:[%s258 + $0x2c0] sm:$0xff]
        %v406 = vld [vmem:[%s258 + $0x2c8] sm:$0xff]
        %v407 = vld [vmem:[%s258 + $0x2d0] sm:$0xff]
        %v408 = vld [vmem:[%s258 + $0x2d8] sm:$0xff]
        %v409 = vld [vmem:[%s258 + $0x2e0] sm:$0xff]
        %v410 = vld [vmem:[%s258 + $0x2e8] sm:$0xff]
        %v411 = vld [vmem:[%s258 + $0x2f0] sm:$0xff]
        %v412 = vld [vmem:[%s258 + $0x2f8] sm:$0xff]
        %v413 = vld [vmem:[%s258 + $0x300] sm:$0xff]
        %v414 = vld [vmem:[%s258 + $0x308] sm:$0xff]
        %v415 = vld [vmem:[%s258 + $0x310] sm:$0xff]
        %v416 = vld [vmem:[%s258 + $0x318] sm:$0xff]
        %v417 = vld [vmem:[%s258 + $0x320] sm:$0xff]
        %v418 = vld [vmem:[%s258 + $0x328] sm:$0xff]
        %v419 = vld [vmem:[%s258 + $0x330] sm:$0xff]
        %v420 = vld [vmem:[%s258 + $0x338] sm:$0xff]
        %v421 = vld [vmem:[%s258 + $0x340] sm:$0xff]
        %v422 = vld [vmem:[%s258 + $0x348] sm:$0xff]
        %v423 = vld [vmem:[%s258 + $0x350] sm:$0xff]
        %v424 = vld [vmem:[%s258 + $0x358] sm:$0xff]
        %v425 = vld [vmem:[%s258 + $0x360] sm:$0xff]
        %v426 = vld [vmem:[%s258 + $0x368] sm:$0xff]
        %v427 = vld [vmem:[%s258 + $0x370] sm:$0xff]
        %v428 = vld [vmem:[%s258 + $0x378] sm:$0xff]
        %v429 = vld [vmem:[%s258 + $0x380] sm:$0xff]
        %v430 = vld [vmem:[%s258 + $0x388] sm:$0xff]
        %v431 = vld [vmem:[%s258 + $0x390] sm:$0xff]
        %v432 = vld [vmem:[%s258 + $0x398] sm:$0xff]
        %v433 = vld [vmem:[%s258 + $0x3a0] sm:$0xff]
        %v434 = vld [vmem:[%s258 + $0x3a8] sm:$0xff]
        %v435 = vld [vmem:[%s258 + $0x3b0] sm:$0xff]
        %v436 = vld [vmem:[%s258 + $0x3b8] sm:$0xff]
        %v437 = vld [vmem:[%s258 + $0x3c0] sm:$0xff]
        %v438 = vld [vmem:[%s258 + $0x3c8] sm:$0xff]
        %v439 = vld [vmem:[%s258 + $0x3d0] sm:$0xff]
        %v440 = vld [vmem:[%s258 + $0x3d8] sm:$0xff]
        %v441 = vld [vmem:[%s258 + $0x3e0] sm:$0xff]
        %v442 = vld [vmem:[%s258 + $0x3e8] sm:$0xff]
        %v443 = vld [vmem:[%s258 + $0x3f0] sm:$0xff]
        %v444 = vld [vmem:[%s258 + $0x3f8] sm:$0xff]
        %v445 = vadd.f32 %v317, %v318
        %446 = vadd.xlane.f32.xlu0 %v445
        %v447 = vpop.xlane.xlu0 %446
        %v448 = vadd.f32 %v319, %v320
        %449 = vadd.xlane.f32.xlu0 %v448
        %v450 = vpop.xlane.xlu0 %449
        %v451 = vadd.f32 %v321, %v322
        %452 = vadd.xlane.f32.xlu0 %v451
        %v453 = vpop.xlane.xlu0 %452
        %v454 = vadd.f32 %v323, %v324
        %455 = vadd.xlane.f32.xlu0 %v454
        %v456 = vpop.xlane.xlu0 %455
        %v457 = vadd.f32 %v325, %v326
        %458 = vadd.xlane.f32.xlu0 %v457
        %v459 = vpop.xlane.xlu0 %458
        %v460 = vadd.f32 %v327, %v328
        %461 = vadd.xlane.f32.xlu0 %v460
        %v462 = vpop.xlane.xlu0 %461
        %v463 = vadd.f32 %v329, %v330
        %464 = vadd.xlane.f32.xlu0 %v463
        %v465 = vpop.xlane.xlu0 %464
        %v466 = vadd.f32 %v331, %v332
        %467 = vadd.xlane.f32.xlu0 %v466
        %v468 = vpop.xlane.xlu0 %467
        %v469 = vadd.f32 %v333, %v334
        %470 = vadd.xlane.f32.xlu0 %v469
        %v471 = vpop.xlane.xlu0 %470
        %v472 = vadd.f32 %v335, %v336
        %473 = vadd.xlane.f32.xlu0 %v472
        %v474 = vpop.xlane.xlu0 %473
        %v475 = vadd.f32 %v337, %v338
        %476 = vadd.xlane.f32.xlu0 %v475
        %v477 = vpop.xlane.xlu0 %476
        %v478 = vadd.f32 %v339, %v340
        %479 = vadd.xlane.f32.xlu0 %v478
        %v480 = vpop.xlane.xlu0 %479
        %v481 = vadd.f32 %v341, %v342
        %482 = vadd.xlane.f32.xlu0 %v481
        %v483 = vpop.xlane.xlu0 %482
        %v484 = vadd.f32 %v343, %v344
        %485 = vadd.xlane.f32.xlu0 %v484
        %v486 = vpop.xlane.xlu0 %485
        %v487 = vadd.f32 %v345, %v346
        %488 = vadd.xlane.f32.xlu0 %v487
        %v489 = vpop.xlane.xlu0 %488
        %v490 = vadd.f32 %v347, %v348
        %491 = vadd.xlane.f32.xlu0 %v490
        %v492 = vpop.xlane.xlu0 %491
        %v493 = vadd.f32 %v349, %v350
        %494 = vadd.xlane.f32.xlu0 %v493
        %v495 = vpop.xlane.xlu0 %494
        %v496 = vadd.f32 %v351, %v352
        %497 = vadd.xlane.f32.xlu0 %v496
        %v498 = vpop.xlane.xlu0 %497
        %v499 = vadd.f32 %v353, %v354
        %500 = vadd.xlane.f32.xlu0 %v499
        %v501 = vpop.xlane.xlu0 %500
        %v502 = vadd.f32 %v355, %v356
        %503 = vadd.xlane.f32.xlu0 %v502
        %v504 = vpop.xlane.xlu0 %503
        %v505 = vadd.f32 %v357, %v358
        %506 = vadd.xlane.f32.xlu0 %v505
        %v507 = vpop.xlane.xlu0 %506
        %v508 = vadd.f32 %v359, %v360
        %509 = vadd.xlane.f32.xlu0 %v508
        %v510 = vpop.xlane.xlu0 %509
        %v511 = vadd.f32 %v361, %v362
        %512 = vadd.xlane.f32.xlu0 %v511
        %v513 = vpop.xlane.xlu0 %512
        %v514 = vadd.f32 %v363, %v364
        %515 = vadd.xlane.f32.xlu0 %v514
        %v516 = vpop.xlane.xlu0 %515
        %v517 = vadd.f32 %v365, %v366
        %518 = vadd.xlane.f32.xlu0 %v517
        %v519 = vpop.xlane.xlu0 %518
        %v520 = vadd.f32 %v367, %v368
        %521 = vadd.xlane.f32.xlu0 %v520
        %v522 = vpop.xlane.xlu0 %521
        %v523 = vadd.f32 %v369, %v370
        %524 = vadd.xlane.f32.xlu0 %v523
        %v525 = vpop.xlane.xlu0 %524
        %v526 = vadd.f32 %v371, %v372
        %527 = vadd.xlane.f32.xlu0 %v526
        %v528 = vpop.xlane.xlu0 %527
        %v529 = vadd.f32 %v373, %v374
        %530 = vadd.xlane.f32.xlu0 %v529
        %v531 = vpop.xlane.xlu0 %530
        %v532 = vadd.f32 %v375, %v376
        %533 = vadd.xlane.f32.xlu0 %v532
        %v534 = vpop.xlane.xlu0 %533
        %v535 = vadd.f32 %v377, %v378
        %536 = vadd.xlane.f32.xlu0 %v535
        %v537 = vpop.xlane.xlu0 %536
        %v538 = vadd.f32 %v379, %v380
        %539 = vadd.xlane.f32.xlu0 %v538
        %v540 = vpop.xlane.xlu0 %539
        %v541 = vadd.f32 %v381, %v382
        %542 = vadd.xlane.f32.xlu0 %v541
        %v543 = vpop.xlane.xlu0 %542
        %v544 = vadd.f32 %v383, %v384
        %545 = vadd.xlane.f32.xlu0 %v544
        %v546 = vpop.xlane.xlu0 %545
        %v547 = vadd.f32 %v385, %v386
        %548 = vadd.xlane.f32.xlu0 %v547
        %v549 = vpop.xlane.xlu0 %548
        %v550 = vadd.f32 %v387, %v388
        %551 = vadd.xlane.f32.xlu0 %v550
        %v552 = vpop.xlane.xlu0 %551
        %v553 = vadd.f32 %v389, %v390
        %554 = vadd.xlane.f32.xlu0 %v553
        %v555 = vpop.xlane.xlu0 %554
        %v556 = vadd.f32 %v391, %v392
        %557 = vadd.xlane.f32.xlu0 %v556
        %v558 = vpop.xlane.xlu0 %557
        %v559 = vadd.f32 %v393, %v394
        %560 = vadd.xlane.f32.xlu0 %v559
        %v561 = vpop.xlane.xlu0 %560
        %v562 = vadd.f32 %v395, %v396
        %563 = vadd.xlane.f32.xlu0 %v562
        %v564 = vpop.xlane.xlu0 %563
        %v565 = vadd.f32 %v397, %v398
        %566 = vadd.xlane.f32.xlu0 %v565
        %v567 = vpop.xlane.xlu0 %566
        %v568 = vadd.f32 %v399, %v400
        %569 = vadd.xlane.f32.xlu0 %v568
        %v570 = vpop.xlane.xlu0 %569
        %v571 = vadd.f32 %v401, %v402
        %572 = vadd.xlane.f32.xlu0 %v571
        %v573 = vpop.xlane.xlu0 %572
        %v574 = vadd.f32 %v403, %v404
        %575 = vadd.xlane.f32.xlu0 %v574
        %v576 = vpop.xlane.xlu0 %575
        %v577 = vadd.f32 %v405, %v406
        %578 = vadd.xlane.f32.xlu0 %v577
        %v579 = vpop.xlane.xlu0 %578
        %v580 = vadd.f32 %v407, %v408
        %581 = vadd.xlane.f32.xlu0 %v580
        %v582 = vpop.xlane.xlu0 %581
        %v583 = vadd.f32 %v409, %v410
        %584 = vadd.xlane.f32.xlu0 %v583
        %v585 = vpop.xlane.xlu0 %584
        %v586 = vadd.f32 %v411, %v412
        %587 = vadd.xlane.f32.xlu0 %v586
        %v588 = vpop.xlane.xlu0 %587
        %v589 = vadd.f32 %v413, %v414
        %590 = vadd.xlane.f32.xlu0 %v589
        %v591 = vpop.xlane.xlu0 %590
        %v592 = vadd.f32 %v415, %v416
        %593 = vadd.xlane.f32.xlu0 %v592
        %v594 = vpop.xlane.xlu0 %593
        %v595 = vadd.f32 %v417, %v418
        %596 = vadd.xlane.f32.xlu0 %v595
        %v597 = vpop.xlane.xlu0 %596
        %v598 = vadd.f32 %v419, %v420
        %599 = vadd.xlane.f32.xlu0 %v598
        %v600 = vpop.xlane.xlu0 %599
        %v601 = vadd.f32 %v421, %v422
        %602 = vadd.xlane.f32.xlu0 %v601
        %v603 = vpop.xlane.xlu0 %602
        %v604 = vadd.f32 %v423, %v424
        %605 = vadd.xlane.f32.xlu0 %v604
        %v606 = vpop.xlane.xlu0 %605
        %v607 = vadd.f32 %v425, %v426
        %608 = vadd.xlane.f32.xlu0 %v607
        %v609 = vpop.xlane.xlu0 %608
        %v610 = vadd.f32 %v427, %v428
        %611 = vadd.xlane.f32.xlu0 %v610
        %v612 = vpop.xlane.xlu0 %611
        %v613 = vadd.f32 %v429, %v430
        %614 = vadd.xlane.f32.xlu0 %v613
        %v615 = vpop.xlane.xlu0 %614
        %v616 = vadd.f32 %v431, %v432
        %617 = vadd.xlane.f32.xlu0 %v616
        %v618 = vpop.xlane.xlu0 %617
        %v619 = vadd.f32 %v433, %v434
        %620 = vadd.xlane.f32.xlu0 %v619
        %v621 = vpop.xlane.xlu0 %620
        %v622 = vadd.f32 %v435, %v436
        %623 = vadd.xlane.f32.xlu0 %v622
        %v624 = vpop.xlane.xlu0 %623
        %v625 = vadd.f32 %v437, %v438
        %626 = vadd.xlane.f32.xlu0 %v625
        %v627 = vpop.xlane.xlu0 %626
        %v628 = vadd.f32 %v439, %v440
        %629 = vadd.xlane.f32.xlu0 %v628
        %v630 = vpop.xlane.xlu0 %629
        %v631 = vadd.f32 %v441, %v442
        %632 = vadd.xlane.f32.xlu0 %v631
        %v633 = vpop.xlane.xlu0 %632
        %v634 = vadd.f32 %v443, %v444
        %635 = vadd.xlane.f32.xlu0 %v634
        %v636 = vpop.xlane.xlu0 %635
        %v637 = vmul.f32 %v447, 0.00390625
        %v638 = vmul.f32 %v450, 0.00390625
        %v639 = vmul.f32 %v453, 0.00390625
        %v640 = vmul.f32 %v456, 0.00390625
        %v641 = vmul.f32 %v459, 0.00390625
        %v642 = vmul.f32 %v462, 0.00390625
        %v643 = vmul.f32 %v465, 0.00390625
        %v644 = vmul.f32 %v468, 0.00390625
        %v645 = vmul.f32 %v471, 0.00390625
        %v646 = vmul.f32 %v474, 0.00390625
        %v647 = vmul.f32 %v477, 0.00390625
        %v648 = vmul.f32 %v480, 0.00390625
        %v649 = vmul.f32 %v483, 0.00390625
        %v650 = vmul.f32 %v486, 0.00390625
        %v651 = vmul.f32 %v489, 0.00390625
        %v652 = vmul.f32 %v492, 0.00390625
        %v653 = vmul.f32 %v495, 0.00390625
        %v654 = vmul.f32 %v498, 0.00390625
        %v655 = vmul.f32 %v501, 0.00390625
        %v656 = vmul.f32 %v504, 0.00390625
        %v657 = vmul.f32 %v507, 0.00390625
        %v658 = vmul.f32 %v510, 0.00390625
        %v659 = vmul.f32 %v513, 0.00390625
        %v660 = vmul.f32 %v516, 0.00390625
        %v661 = vmul.f32 %v519, 0.00390625
        %v662 = vmul.f32 %v522, 0.00390625
        %v663 = vmul.f32 %v525, 0.00390625
        %v664 = vmul.f32 %v528, 0.00390625
        %v665 = vmul.f32 %v531, 0.00390625
        %v666 = vmul.f32 %v534, 0.00390625
        %v667 = vmul.f32 %v537, 0.00390625
        %v668 = vmul.f32 %v540, 0.00390625
        %v669 = vmul.f32 %v543, 0.00390625
        %v670 = vmul.f32 %v546, 0.00390625
        %v671 = vmul.f32 %v549, 0.00390625
        %v672 = vmul.f32 %v552, 0.00390625
        %v673 = vmul.f32 %v555, 0.00390625
        %v674 = vmul.f32 %v558, 0.00390625
        %v675 = vmul.f32 %v561, 0.00390625
        %v676 = vmul.f32 %v564, 0.00390625
        %v677 = vmul.f32 %v567, 0.00390625
        %v678 = vmul.f32 %v570, 0.00390625
        %v679 = vmul.f32 %v573, 0.00390625
        %v680 = vmul.f32 %v576, 0.00390625
        %v681 = vmul.f32 %v579, 0.00390625
        %v682 = vmul.f32 %v582, 0.00390625
        %v683 = vmul.f32 %v585, 0.00390625
        %v684 = vmul.f32 %v588, 0.00390625
        %v685 = vmul.f32 %v591, 0.00390625
        %v686 = vmul.f32 %v594, 0.00390625
        %v687 = vmul.f32 %v597, 0.00390625
        %v688 = vmul.f32 %v600, 0.00390625
        %v689 = vmul.f32 %v603, 0.00390625
        %v690 = vmul.f32 %v606, 0.00390625
        %v691 = vmul.f32 %v609, 0.00390625
        %v692 = vmul.f32 %v612, 0.00390625
        %v693 = vmul.f32 %v615, 0.00390625
        %v694 = vmul.f32 %v618, 0.00390625
        %v695 = vmul.f32 %v621, 0.00390625
        %v696 = vmul.f32 %v624, 0.00390625
        %v697 = vmul.f32 %v627, 0.00390625
        %v698 = vmul.f32 %v630, 0.00390625
        %v699 = vmul.f32 %v633, 0.00390625
        %v700 = vmul.f32 %v636, 0.00390625
        %s701 = smul.u32 %s28, 16
        %v766 = vlaneseq
        %v767 = vand.u32 %v766, 127
        %v768 = vlaneseq
        %v769 = vshrl.u32 %v768, 7
        %v770 = vsub.s32 %v767, %v769
        %v771 = vrot.slane %v637, %v770
        %v772 = vadd.s32 %v767, 4294967288
        %v773 = vlaneseq
        %v774 = vshrl.u32 %v773, 7
        %v775 = vsub.s32 %v772, %v774
        %v776 = vrot.slane %v638, %v775
        %vm777 = vcmask 130112
        %v778 = vsel %vm777, %v776, %v771
        %v779 = vlaneseq
        %v780 = vshrl.u32 %v779, 7
        %v781 = vsub.s32 %v767, %v780
        %v782 = vrot.slane %v639, %v781
        %v783 = vlaneseq
        %v784 = vshrl.u32 %v783, 7
        %v785 = vsub.s32 %v772, %v784
        %v786 = vrot.slane %v640, %v785
        %v787 = vsel %vm777, %v786, %v782
        %v788 = vlaneseq
        %v789 = vshrl.u32 %v788, 7
        %v790 = vsub.s32 %v767, %v789
        %v791 = vrot.slane %v641, %v790
        %v792 = vlaneseq
        %v793 = vshrl.u32 %v792, 7
        %v794 = vsub.s32 %v772, %v793
        %v795 = vrot.slane %v642, %v794
        %v796 = vsel %vm777, %v795, %v791
        %v797 = vlaneseq
        %v798 = vshrl.u32 %v797, 7
        %v799 = vsub.s32 %v767, %v798
        %v800 = vrot.slane %v643, %v799
        %v801 = vlaneseq
        %v802 = vshrl.u32 %v801, 7
        %v803 = vsub.s32 %v772, %v802
        %v804 = vrot.slane %v644, %v803
        %v805 = vsel %vm777, %v804, %v800
        %v806 = vlaneseq
        %v807 = vshrl.u32 %v806, 7
        %v808 = vsub.s32 %v767, %v807
        %v809 = vrot.slane %v645, %v808
        %v810 = vlaneseq
        %v811 = vshrl.u32 %v810, 7
        %v812 = vsub.s32 %v772, %v811
        %v813 = vrot.slane %v646, %v812
        %v814 = vsel %vm777, %v813, %v809
        %v815 = vlaneseq
        %v816 = vshrl.u32 %v815, 7
        %v817 = vsub.s32 %v767, %v816
        %v818 = vrot.slane %v647, %v817
        %v819 = vlaneseq
        %v820 = vshrl.u32 %v819, 7
        %v821 = vsub.s32 %v772, %v820
        %v822 = vrot.slane %v648, %v821
        %v823 = vsel %vm777, %v822, %v818
        %v824 = vlaneseq
        %v825 = vshrl.u32 %v824, 7
        %v826 = vsub.s32 %v767, %v825
        %v827 = vrot.slane %v649, %v826
        %v828 = vlaneseq
        %v829 = vshrl.u32 %v828, 7
        %v830 = vsub.s32 %v772, %v829
        %v831 = vrot.slane %v650, %v830
        %v832 = vsel %vm777, %v831, %v827
        %v833 = vlaneseq
        %v834 = vshrl.u32 %v833, 7
        %v835 = vsub.s32 %v767, %v834
        %v836 = vrot.slane %v651, %v835
        %v837 = vlaneseq
        %v838 = vshrl.u32 %v837, 7
        %v839 = vsub.s32 %v772, %v838
        %v840 = vrot.slane %v652, %v839
        %v841 = vsel %vm777, %v840, %v836
        %v842 = vlaneseq
        %v843 = vshrl.u32 %v842, 7
        %v844 = vsub.s32 %v767, %v843
        %v845 = vrot.slane %v653, %v844
        %v846 = vlaneseq
        %v847 = vshrl.u32 %v846, 7
        %v848 = vsub.s32 %v772, %v847
        %v849 = vrot.slane %v654, %v848
        %v850 = vsel %vm777, %v849, %v845
        %v851 = vlaneseq
        %v852 = vshrl.u32 %v851, 7
        %v853 = vsub.s32 %v767, %v852
        %v854 = vrot.slane %v655, %v853
        %v855 = vlaneseq
        %v856 = vshrl.u32 %v855, 7
        %v857 = vsub.s32 %v772, %v856
        %v858 = vrot.slane %v656, %v857
        %v859 = vsel %vm777, %v858, %v854
        %v860 = vlaneseq
        %v861 = vshrl.u32 %v860, 7
        %v862 = vsub.s32 %v767, %v861
        %v863 = vrot.slane %v657, %v862
        %v864 = vlaneseq
        %v865 = vshrl.u32 %v864, 7
        %v866 = vsub.s32 %v772, %v865
        %v867 = vrot.slane %v658, %v866
        %v868 = vsel %vm777, %v867, %v863
        %v869 = vlaneseq
        %v870 = vshrl.u32 %v869, 7
        %v871 = vsub.s32 %v767, %v870
        %v872 = vrot.slane %v659, %v871
        %v873 = vlaneseq
        %v874 = vshrl.u32 %v873, 7
        %v875 = vsub.s32 %v772, %v874
        %v876 = vrot.slane %v660, %v875
        %v877 = vsel %vm777, %v876, %v872
        %v878 = vlaneseq
        %v879 = vshrl.u32 %v878, 7
        %v880 = vsub.s32 %v767, %v879
        %v881 = vrot.slane %v661, %v880
        %v882 = vlaneseq
        %v883 = vshrl.u32 %v882, 7
        %v884 = vsub.s32 %v772, %v883
        %v885 = vrot.slane %v662, %v884
        %v886 = vsel %vm777, %v885, %v881
        %v887 = vlaneseq
        %v888 = vshrl.u32 %v887, 7
        %v889 = vsub.s32 %v767, %v888
        %v890 = vrot.slane %v663, %v889
        %v891 = vlaneseq
        %v892 = vshrl.u32 %v891, 7
        %v893 = vsub.s32 %v772, %v892
        %v894 = vrot.slane %v664, %v893
        %v895 = vsel %vm777, %v894, %v890
        %v896 = vlaneseq
        %v897 = vshrl.u32 %v896, 7
        %v898 = vsub.s32 %v767, %v897
        %v899 = vrot.slane %v665, %v898
        %v900 = vlaneseq
        %v901 = vshrl.u32 %v900, 7
        %v902 = vsub.s32 %v772, %v901
        %v903 = vrot.slane %v666, %v902
        %v904 = vsel %vm777, %v903, %v899
        %v905 = vlaneseq
        %v906 = vshrl.u32 %v905, 7
        %v907 = vsub.s32 %v767, %v906
        %v908 = vrot.slane %v667, %v907
        %v909 = vlaneseq
        %v910 = vshrl.u32 %v909, 7
        %v911 = vsub.s32 %v772, %v910
        %v912 = vrot.slane %v668, %v911
        %v913 = vsel %vm777, %v912, %v908
        %v914 = vlaneseq
        %v915 = vshrl.u32 %v914, 7
        %v916 = vsub.s32 %v767, %v915
        %v917 = vrot.slane %v669, %v916
        %v918 = vlaneseq
        %v919 = vshrl.u32 %v918, 7
        %v920 = vsub.s32 %v772, %v919
        %v921 = vrot.slane %v670, %v920
        %v922 = vsel %vm777, %v921, %v917
        %v923 = vlaneseq
        %v924 = vshrl.u32 %v923, 7
        %v925 = vsub.s32 %v767, %v924
        %v926 = vrot.slane %v671, %v925
        %v927 = vlaneseq
        %v928 = vshrl.u32 %v927, 7
        %v929 = vsub.s32 %v772, %v928
        %v930 = vrot.slane %v672, %v929
        %v931 = vsel %vm777, %v930, %v926
        %v932 = vlaneseq
        %v933 = vshrl.u32 %v932, 7
        %v934 = vsub.s32 %v767, %v933
        %v935 = vrot.slane %v673, %v934
        %v936 = vlaneseq
        %v937 = vshrl.u32 %v936, 7
        %v938 = vsub.s32 %v772, %v937
        %v939 = vrot.slane %v674, %v938
        %v940 = vsel %vm777, %v939, %v935
        %v941 = vlaneseq
        %v942 = vshrl.u32 %v941, 7
        %v943 = vsub.s32 %v767, %v942
        %v944 = vrot.slane %v675, %v943
        %v945 = vlaneseq
        %v946 = vshrl.u32 %v945, 7
        %v947 = vsub.s32 %v772, %v946
        %v948 = vrot.slane %v676, %v947
        %v949 = vsel %vm777, %v948, %v944
        %v950 = vlaneseq
        %v951 = vshrl.u32 %v950, 7
        %v952 = vsub.s32 %v767, %v951
        %v953 = vrot.slane %v677, %v952
        %v954 = vlaneseq
        %v955 = vshrl.u32 %v954, 7
        %v956 = vsub.s32 %v772, %v955
        %v957 = vrot.slane %v678, %v956
        %v958 = vsel %vm777, %v957, %v953
        %v959 = vlaneseq
        %v960 = vshrl.u32 %v959, 7
        %v961 = vsub.s32 %v767, %v960
        %v962 = vrot.slane %v679, %v961
        %v963 = vlaneseq
        %v964 = vshrl.u32 %v963, 7
        %v965 = vsub.s32 %v772, %v964
        %v966 = vrot.slane %v680, %v965
        %v967 = vsel %vm777, %v966, %v962
        %v968 = vlaneseq
        %v969 = vshrl.u32 %v968, 7
        %v970 = vsub.s32 %v767, %v969
        %v971 = vrot.slane %v681, %v970
        %v972 = vlaneseq
        %v973 = vshrl.u32 %v972, 7
        %v974 = vsub.s32 %v772, %v973
        %v975 = vrot.slane %v682, %v974
        %v976 = vsel %vm777, %v975, %v971
        %v977 = vlaneseq
        %v978 = vshrl.u32 %v977, 7
        %v979 = vsub.s32 %v767, %v978
        %v980 = vrot.slane %v683, %v979
        %v981 = vlaneseq
        %v982 = vshrl.u32 %v981, 7
        %v983 = vsub.s32 %v772, %v982
        %v984 = vrot.slane %v684, %v983
        %v985 = vsel %vm777, %v984, %v980
        %v986 = vlaneseq
        %v987 = vshrl.u32 %v986, 7
        %v988 = vsub.s32 %v767, %v987
        %v989 = vrot.slane %v685, %v988
        %v990 = vlaneseq
        %v991 = vshrl.u32 %v990, 7
        %v992 = vsub.s32 %v772, %v991
        %v993 = vrot.slane %v686, %v992
        %v994 = vsel %vm777, %v993, %v989
        %v995 = vlaneseq
        %v996 = vshrl.u32 %v995, 7
        %v997 = vsub.s32 %v767, %v996
        %v998 = vrot.slane %v687, %v997
        %v999 = vlaneseq
        %v1000 = vshrl.u32 %v999, 7
        %v1001 = vsub.s32 %v772, %v1000
        %v1002 = vrot.slane %v688, %v1001
        %v1003 = vsel %vm777, %v1002, %v998
        %v1004 = vlaneseq
        %v1005 = vshrl.u32 %v1004, 7
        %v1006 = vsub.s32 %v767, %v1005
        %v1007 = vrot.slane %v689, %v1006
        %v1008 = vlaneseq
        %v1009 = vshrl.u32 %v1008, 7
        %v1010 = vsub.s32 %v772, %v1009
        %v1011 = vrot.slane %v690, %v1010
        %v1012 = vsel %vm777, %v1011, %v1007
        %v1013 = vlaneseq
        %v1014 = vshrl.u32 %v1013, 7
        %v1015 = vsub.s32 %v767, %v1014
        %v1016 = vrot.slane %v691, %v1015
        %v1017 = vlaneseq
        %v1018 = vshrl.u32 %v1017, 7
        %v1019 = vsub.s32 %v772, %v1018
        %v1020 = vrot.slane %v692, %v1019
        %v1021 = vsel %vm777, %v1020, %v1016
        %v1022 = vlaneseq
        %v1023 = vshrl.u32 %v1022, 7
        %v1024 = vsub.s32 %v767, %v1023
        %v1025 = vrot.slane %v693, %v1024
        %v1026 = vlaneseq
        %v1027 = vshrl.u32 %v1026, 7
        %v1028 = vsub.s32 %v772, %v1027
        %v1029 = vrot.slane %v694, %v1028
        %v1030 = vsel %vm777, %v1029, %v1025
        %v1031 = vlaneseq
        %v1032 = vshrl.u32 %v1031, 7
        %v1033 = vsub.s32 %v767, %v1032
        %v1034 = vrot.slane %v695, %v1033
        %v1035 = vlaneseq
        %v1036 = vshrl.u32 %v1035, 7
        %v1037 = vsub.s32 %v772, %v1036
        %v1038 = vrot.slane %v696, %v1037
        %v1039 = vsel %vm777, %v1038, %v1034
        %v1040 = vlaneseq
        %v1041 = vshrl.u32 %v1040, 7
        %v1042 = vsub.s32 %v767, %v1041
        %v1043 = vrot.slane %v697, %v1042
        %v1044 = vlaneseq
        %v1045 = vshrl.u32 %v1044, 7
        %v1046 = vsub.s32 %v772, %v1045
        %v1047 = vrot.slane %v698, %v1046
        %v1048 = vsel %vm777, %v1047, %v1043
        %v1049 = vlaneseq
        %v1050 = vshrl.u32 %v1049, 7
        %v1051 = vsub.s32 %v767, %v1050
        %v1052 = vrot.slane %v699, %v1051
        %v1053 = vlaneseq
        %v1054 = vshrl.u32 %v1053, 7
        %v1055 = vsub.s32 %v772, %v1054
        %v1056 = vrot.slane %v700, %v1055
        %v1057 = vsel %vm777, %v1056, %v1052
        %vm1058 = vcmask 1041409
        %v1059 = vsel %vm1058, %v787, %v778
        %vm1060 = vcmask 1042434
        %v1061 = vsel %vm1060, %v796, %v1059
        %vm1062 = vcmask 1043459
        %v1063 = vsel %vm1062, %v805, %v1061
        %vm1064 = vcmask 1044484
        %v1065 = vsel %vm1064, %v814, %v1063
        %vm1066 = vcmask 1045509
        %v1067 = vsel %vm1066, %v823, %v1065
        %vm1068 = vcmask 1046534
        %v1069 = vsel %vm1068, %v832, %v1067
        %vm1070 = vcmask 1047559
        %v1071 = vsel %vm1070, %v841, %v1069
        %v1072 = vsel %vm1058, %v859, %v850
        %v1073 = vsel %vm1060, %v868, %v1072
        %v1074 = vsel %vm1062, %v877, %v1073
        %v1075 = vsel %vm1064, %v886, %v1074
        %v1076 = vsel %vm1066, %v895, %v1075
        %v1077 = vsel %vm1068, %v904, %v1076
        %v1078 = vsel %vm1070, %v913, %v1077
        %v1079 = vsel %vm1058, %v931, %v922
        %v1080 = vsel %vm1060, %v940, %v1079
        %v1081 = vsel %vm1062, %v949, %v1080
        %v1082 = vsel %vm1064, %v958, %v1081
        %v1083 = vsel %vm1066, %v967, %v1082
        %v1084 = vsel %vm1068, %v976, %v1083
        %v1085 = vsel %vm1070, %v985, %v1084
        %v1086 = vsel %vm1058, %v1003, %v994
        %v1087 = vsel %vm1060, %v1012, %v1086
        %v1088 = vsel %vm1062, %v1021, %v1087
        %v1089 = vsel %vm1064, %v1030, %v1088
        %v1090 = vsel %vm1066, %v1039, %v1089
        %v1091 = vsel %vm1068, %v1048, %v1090
        %v1092 = vsel %vm1070, %v1057, %v1091
        %1097 = vxpose.xlu0.b32.start [1/16] %v1071, 128
        %1098 = vxpose.xlu0.b32.cont [2/16] %v1078, 128
        %1099 = vxpose.xlu0.b32.cont [3/16] %v1085, 128
        %1100 = vxpose.xlu0.b32.cont [4/16] %v1092, 128
        %1101 = vxpose.xlu0.b32.cont [5/16] 0.0, 128
        %1102 = vxpose.xlu0.b32.cont [6/16] 0.0, 128
        %1103 = vxpose.xlu0.b32.cont [7/16] 0.0, 128
        %1104 = vxpose.xlu0.b32.cont [8/16] 0.0, 128
        %1105 = vxpose.xlu0.b32.cont [9/16] 0.0, 128
        %1106 = vxpose.xlu0.b32.cont [10/16] 0.0, 128
        %1107 = vxpose.xlu0.b32.cont [11/16] 0.0, 128
        %1108 = vxpose.xlu0.b32.cont [12/16] 0.0, 128
        %1109 = vxpose.xlu0.b32.cont [13/16] 0.0, 128
        %1110 = vxpose.xlu0.b32.cont [14/16] 0.0, 128
        %1111 = vxpose.xlu0.b32.cont [15/16] 0.0, 128
        %1112 = vxpose.xlu0.b32.end [16/16] 0.0, 128
        %v1113 = vpop.trf.xlu0
        %v1114 = vpop.trf.xlu0
        %v1115 = vpop.trf.xlu0
        %v1116 = vpop.trf.xlu0
        %v1117 = vpop.trf.xlu0
        %v1118 = vpop.trf.xlu0
        %v1119 = vpop.trf.xlu0
        %v1120 = vpop.trf.xlu0
        %v1121 = vpop.trf.xlu0
        %v1122 = vpop.trf.xlu0
        %v1123 = vpop.trf.xlu0
        %v1124 = vpop.trf.xlu0
        %v1125 = vpop.trf.xlu0
        %v1126 = vpop.trf.xlu0
        %v1127 = vpop.trf.xlu0
        %v1128 = vpop.trf.xlu0
        %s1129 = scalar_lea.vmem [#allocation2], %s701
        %vm1130 = vcmask 261120
        %1131 = vst.msk [vmem:[%s1129] sm:$0xff] %vm1130, %v1113
        %1132 = vst.msk [vmem:[%s1129 + $0x8] sm:$0xff] %vm1130, %v1114
        %v1133 = vld [vmem:[#allocation3] sm:$0xff]
        %v1134 = vld [vmem:[#allocation3 + $0x8] sm:$0xff]
        %v1135 = vld [vmem:[#allocation3 + $0x10] sm:$0xff]
        %v1136 = vld [vmem:[#allocation3 + $0x18] sm:$0xff]
        %v1137 = vld [vmem:[#allocation3 + $0x20] sm:$0xff]
        %v1138 = vld [vmem:[#allocation3 + $0x28] sm:$0xff]
        %v1139 = vld [vmem:[#allocation3 + $0x30] sm:$0xff]
        %v1140 = vld [vmem:[#allocation3 + $0x38] sm:$0xff]
        %v1141 = vadd.f32 %v317, %v319
        %v1142 = vrot.slane %v1141, 4
        %v1143 = vadd.f32 %v1141, %v1142
        %v1144 = vrot.slane %v1143, 2
        %v1145 = vadd.f32 %v1143, %v1144
        %v1146 = vrot.slane %v1145, 1
        %v1147 = vadd.f32 %v1145, %v1146
        %v1148 = vadd.f32 %v318, %v320
        %v1149 = vrot.slane %v1148, 4
        %v1150 = vadd.f32 %v1148, %v1149
        %v1151 = vrot.slane %v1150, 2
        %v1152 = vadd.f32 %v1150, %v1151
        %v1153 = vrot.slane %v1152, 1
        %v1154 = vadd.f32 %v1152, %v1153
        %v1155 = vadd.f32 %v321, %v323
        %v1156 = vrot.slane %v1155, 4
        %v1157 = vadd.f32 %v1155, %v1156
        %v1158 = vrot.slane %v1157, 2
        %v1159 = vadd.f32 %v1157, %v1158
        %v1160 = vrot.slane %v1159, 1
        %v1161 = vadd.f32 %v1159, %v1160
        %v1162 = vadd.f32 %v322, %v324
        %v1163 = vrot.slane %v1162, 4
        %v1164 = vadd.f32 %v1162, %v1163
        %v1165 = vrot.slane %v1164, 2
        %v1166 = vadd.f32 %v1164, %v1165
        %v1167 = vrot.slane %v1166, 1
        %v1168 = vadd.f32 %v1166, %v1167
        %v1169 = vadd.f32 %v325, %v327
        %v1170 = vrot.slane %v1169, 4
        %v1171 = vadd.f32 %v1169, %v1170
        %v1172 = vrot.slane %v1171, 2
        %v1173 = vadd.f32 %v1171, %v1172
        %v1174 = vrot.slane %v1173, 1
        %v1175 = vadd.f32 %v1173, %v1174
        %v1176 = vadd.f32 %v326, %v328
        %v1177 = vrot.slane %v1176, 4
        %v1178 = vadd.f32 %v1176, %v1177
        %v1179 = vrot.slane %v1178, 2
        %v1180 = vadd.f32 %v1178, %v1179
        %v1181 = vrot.slane %v1180, 1
        %v1182 = vadd.f32 %v1180, %v1181
        %v1183 = vadd.f32 %v329, %v331
        %v1184 = vrot.slane %v1183, 4
        %v1185 = vadd.f32 %v1183, %v1184
        %v1186 = vrot.slane %v1185, 2
        %v1187 = vadd.f32 %v1185, %v1186
        %v1188 = vrot.slane %v1187, 1
        %v1189 = vadd.f32 %v1187, %v1188
        %v1190 = vadd.f32 %v330, %v332
        %v1191 = vrot.slane %v1190, 4
        %v1192 = vadd.f32 %v1190, %v1191
        %v1193 = vrot.slane %v1192, 2
        %v1194 = vadd.f32 %v1192, %v1193
        %v1195 = vrot.slane %v1194, 1
        %v1196 = vadd.f32 %v1194, %v1195
        %v1197 = vadd.f32 %v333, %v335
        %v1198 = vrot.slane %v1197, 4
        %v1199 = vadd.f32 %v1197, %v1198
        %v1200 = vrot.slane %v1199, 2
        %v1201 = vadd.f32 %v1199, %v1200
        %v1202 = vrot.slane %v1201, 1
        %v1203 = vadd.f32 %v1201, %v1202
        %v1204 = vadd.f32 %v334, %v336
        %v1205 = vrot.slane %v1204, 4
        %v1206 = vadd.f32 %v1204, %v1205
        %v1207 = vrot.slane %v1206, 2
        %v1208 = vadd.f32 %v1206, %v1207
        %v1209 = vrot.slane %v1208, 1
        %v1210 = vadd.f32 %v1208, %v1209
        %v1211 = vadd.f32 %v337, %v339
        %v1212 = vrot.slane %v1211, 4
        %v1213 = vadd.f32 %v1211, %v1212
        %v1214 = vrot.slane %v1213, 2
        %v1215 = vadd.f32 %v1213, %v1214
        %v1216 = vrot.slane %v1215, 1
        %v1217 = vadd.f32 %v1215, %v1216
        %v1218 = vadd.f32 %v338, %v340
        %v1219 = vrot.slane %v1218, 4
        %v1220 = vadd.f32 %v1218, %v1219
        %v1221 = vrot.slane %v1220, 2
        %v1222 = vadd.f32 %v1220, %v1221
        %v1223 = vrot.slane %v1222, 1
        %v1224 = vadd.f32 %v1222, %v1223
        %v1225 = vadd.f32 %v341, %v343
        %v1226 = vrot.slane %v1225, 4
        %v1227 = vadd.f32 %v1225, %v1226
        %v1228 = vrot.slane %v1227, 2
        %v1229 = vadd.f32 %v1227, %v1228
        %v1230 = vrot.slane %v1229, 1
        %v1231 = vadd.f32 %v1229, %v1230
        %v1232 = vadd.f32 %v342, %v344
        %v1233 = vrot.slane %v1232, 4
        %v1234 = vadd.f32 %v1232, %v1233
        %v1235 = vrot.slane %v1234, 2
        %v1236 = vadd.f32 %v1234, %v1235
        %v1237 = vrot.slane %v1236, 1
        %v1238 = vadd.f32 %v1236, %v1237
        %v1239 = vadd.f32 %v345, %v347
        %v1240 = vrot.slane %v1239, 4
        %v1241 = vadd.f32 %v1239, %v1240
        %v1242 = vrot.slane %v1241, 2
        %v1243 = vadd.f32 %v1241, %v1242
        %v1244 = vrot.slane %v1243, 1
        %v1245 = vadd.f32 %v1243, %v1244
        %v1246 = vadd.f32 %v346, %v348
        %v1247 = vrot.slane %v1246, 4
        %v1248 = vadd.f32 %v1246, %v1247
        %v1249 = vrot.slane %v1248, 2
        %v1250 = vadd.f32 %v1248, %v1249
        %v1251 = vrot.slane %v1250, 1
        %v1252 = vadd.f32 %v1250, %v1251
        %v1253 = vadd.f32 %v349, %v351
        %v1254 = vrot.slane %v1253, 4
        %v1255 = vadd.f32 %v1253, %v1254
        %v1256 = vrot.slane %v1255, 2
        %v1257 = vadd.f32 %v1255, %v1256
        %v1258 = vrot.slane %v1257, 1
        %v1259 = vadd.f32 %v1257, %v1258
        %v1260 = vadd.f32 %v350, %v352
        %v1261 = vrot.slane %v1260, 4
        %v1262 = vadd.f32 %v1260, %v1261
        %v1263 = vrot.slane %v1262, 2
        %v1264 = vadd.f32 %v1262, %v1263
        %v1265 = vrot.slane %v1264, 1
        %v1266 = vadd.f32 %v1264, %v1265
        %v1267 = vadd.f32 %v353, %v355
        %v1268 = vrot.slane %v1267, 4
        %v1269 = vadd.f32 %v1267, %v1268
        %v1270 = vrot.slane %v1269, 2
        %v1271 = vadd.f32 %v1269, %v1270
        %v1272 = vrot.slane %v1271, 1
        %v1273 = vadd.f32 %v1271, %v1272
        %v1274 = vadd.f32 %v354, %v356
        %v1275 = vrot.slane %v1274, 4
        %v1276 = vadd.f32 %v1274, %v1275
        %v1277 = vrot.slane %v1276, 2
        %v1278 = vadd.f32 %v1276, %v1277
        %v1279 = vrot.slane %v1278, 1
        %v1280 = vadd.f32 %v1278, %v1279
        %v1281 = vadd.f32 %v357, %v359
        %v1282 = vrot.slane %v1281, 4
        %v1283 = vadd.f32 %v1281, %v1282
        %v1284 = vrot.slane %v1283, 2
        %v1285 = vadd.f32 %v1283, %v1284
        %v1286 = vrot.slane %v1285, 1
        %v1287 = vadd.f32 %v1285, %v1286
        %v1288 = vadd.f32 %v358, %v360
        %v1289 = vrot.slane %v1288, 4
        %v1290 = vadd.f32 %v1288, %v1289
        %v1291 = vrot.slane %v1290, 2
        %v1292 = vadd.f32 %v1290, %v1291
        %v1293 = vrot.slane %v1292, 1
        %v1294 = vadd.f32 %v1292, %v1293
        %v1295 = vadd.f32 %v361, %v363
        %v1296 = vrot.slane %v1295, 4
        %v1297 = vadd.f32 %v1295, %v1296
        %v1298 = vrot.slane %v1297, 2
        %v1299 = vadd.f32 %v1297, %v1298
        %v1300 = vrot.slane %v1299, 1
        %v1301 = vadd.f32 %v1299, %v1300
        %v1302 = vadd.f32 %v362, %v364
        %v1303 = vrot.slane %v1302, 4
        %v1304 = vadd.f32 %v1302, %v1303
        %v1305 = vrot.slane %v1304, 2
        %v1306 = vadd.f32 %v1304, %v1305
        %v1307 = vrot.slane %v1306, 1
        %v1308 = vadd.f32 %v1306, %v1307
        %v1309 = vadd.f32 %v365, %v367
        %v1310 = vrot.slane %v1309, 4
        %v1311 = vadd.f32 %v1309, %v1310
        %v1312 = vrot.slane %v1311, 2
        %v1313 = vadd.f32 %v1311, %v1312
        %v1314 = vrot.slane %v1313, 1
        %v1315 = vadd.f32 %v1313, %v1314
        %v1316 = vadd.f32 %v366, %v368
        %v1317 = vrot.slane %v1316, 4
        %v1318 = vadd.f32 %v1316, %v1317
        %v1319 = vrot.slane %v1318, 2
        %v1320 = vadd.f32 %v1318, %v1319
        %v1321 = vrot.slane %v1320, 1
        %v1322 = vadd.f32 %v1320, %v1321
        %v1323 = vadd.f32 %v369, %v371
        %v1324 = vrot.slane %v1323, 4
        %v1325 = vadd.f32 %v1323, %v1324
        %v1326 = vrot.slane %v1325, 2
        %v1327 = vadd.f32 %v1325, %v1326
        %v1328 = vrot.slane %v1327, 1
        %v1329 = vadd.f32 %v1327, %v1328
        %v1330 = vadd.f32 %v370, %v372
        %v1331 = vrot.slane %v1330, 4
        %v1332 = vadd.f32 %v1330, %v1331
        %v1333 = vrot.slane %v1332, 2
        %v1334 = vadd.f32 %v1332, %v1333
        %v1335 = vrot.slane %v1334, 1
        %v1336 = vadd.f32 %v1334, %v1335
        %v1337 = vadd.f32 %v373, %v375
        %v1338 = vrot.slane %v1337, 4
        %v1339 = vadd.f32 %v1337, %v1338
        %v1340 = vrot.slane %v1339, 2
        %v1341 = vadd.f32 %v1339, %v1340
        %v1342 = vrot.slane %v1341, 1
        %v1343 = vadd.f32 %v1341, %v1342
        %v1344 = vadd.f32 %v374, %v376
        %v1345 = vrot.slane %v1344, 4
        %v1346 = vadd.f32 %v1344, %v1345
        %v1347 = vrot.slane %v1346, 2
        %v1348 = vadd.f32 %v1346, %v1347
        %v1349 = vrot.slane %v1348, 1
        %v1350 = vadd.f32 %v1348, %v1349
        %v1351 = vadd.f32 %v377, %v379
        %v1352 = vrot.slane %v1351, 4
        %v1353 = vadd.f32 %v1351, %v1352
        %v1354 = vrot.slane %v1353, 2
        %v1355 = vadd.f32 %v1353, %v1354
        %v1356 = vrot.slane %v1355, 1
        %v1357 = vadd.f32 %v1355, %v1356
        %v1358 = vadd.f32 %v378, %v380
        %v1359 = vrot.slane %v1358, 4
        %v1360 = vadd.f32 %v1358, %v1359
        %v1361 = vrot.slane %v1360, 2
        %v1362 = vadd.f32 %v1360, %v1361
        %v1363 = vrot.slane %v1362, 1
        %v1364 = vadd.f32 %v1362, %v1363
        %v1365 = vadd.f32 %v381, %v383
        %v1366 = vrot.slane %v1365, 4
        %v1367 = vadd.f32 %v1365, %v1366
        %v1368 = vrot.slane %v1367, 2
        %v1369 = vadd.f32 %v1367, %v1368
        %v1370 = vrot.slane %v1369, 1
        %v1371 = vadd.f32 %v1369, %v1370
        %v1372 = vadd.f32 %v382, %v384
        %v1373 = vrot.slane %v1372, 4
        %v1374 = vadd.f32 %v1372, %v1373
        %v1375 = vrot.slane %v1374, 2
        %v1376 = vadd.f32 %v1374, %v1375
        %v1377 = vrot.slane %v1376, 1
        %v1378 = vadd.f32 %v1376, %v1377
        %v1379 = vadd.f32 %v385, %v387
        %v1380 = vrot.slane %v1379, 4
        %v1381 = vadd.f32 %v1379, %v1380
        %v1382 = vrot.slane %v1381, 2
        %v1383 = vadd.f32 %v1381, %v1382
        %v1384 = vrot.slane %v1383, 1
        %v1385 = vadd.f32 %v1383, %v1384
        %v1386 = vadd.f32 %v386, %v388
        %v1387 = vrot.slane %v1386, 4
        %v1388 = vadd.f32 %v1386, %v1387
        %v1389 = vrot.slane %v1388, 2
        %v1390 = vadd.f32 %v1388, %v1389
        %v1391 = vrot.slane %v1390, 1
        %v1392 = vadd.f32 %v1390, %v1391
        %v1393 = vadd.f32 %v389, %v391
        %v1394 = vrot.slane %v1393, 4
        %v1395 = vadd.f32 %v1393, %v1394
        %v1396 = vrot.slane %v1395, 2
        %v1397 = vadd.f32 %v1395, %v1396
        %v1398 = vrot.slane %v1397, 1
        %v1399 = vadd.f32 %v1397, %v1398
        %v1400 = vadd.f32 %v390, %v392
        %v1401 = vrot.slane %v1400, 4
        %v1402 = vadd.f32 %v1400, %v1401
        %v1403 = vrot.slane %v1402, 2
        %v1404 = vadd.f32 %v1402, %v1403
        %v1405 = vrot.slane %v1404, 1
        %v1406 = vadd.f32 %v1404, %v1405
        %v1407 = vadd.f32 %v393, %v395
        %v1408 = vrot.slane %v1407, 4
        %v1409 = vadd.f32 %v1407, %v1408
        %v1410 = vrot.slane %v1409, 2
        %v1411 = vadd.f32 %v1409, %v1410
        %v1412 = vrot.slane %v1411, 1
        %v1413 = vadd.f32 %v1411, %v1412
        %v1414 = vadd.f32 %v394, %v396
        %v1415 = vrot.slane %v1414, 4
        %v1416 = vadd.f32 %v1414, %v1415
        %v1417 = vrot.slane %v1416, 2
        %v1418 = vadd.f32 %v1416, %v1417
        %v1419 = vrot.slane %v1418, 1
        %v1420 = vadd.f32 %v1418, %v1419
        %v1421 = vadd.f32 %v397, %v399
        %v1422 = vrot.slane %v1421, 4
        %v1423 = vadd.f32 %v1421, %v1422
        %v1424 = vrot.slane %v1423, 2
        %v1425 = vadd.f32 %v1423, %v1424
        %v1426 = vrot.slane %v1425, 1
        %v1427 = vadd.f32 %v1425, %v1426
        %v1428 = vadd.f32 %v398, %v400
        %v1429 = vrot.slane %v1428, 4
        %v1430 = vadd.f32 %v1428, %v1429
        %v1431 = vrot.slane %v1430, 2
        %v1432 = vadd.f32 %v1430, %v1431
        %v1433 = vrot.slane %v1432, 1
        %v1434 = vadd.f32 %v1432, %v1433
        %v1435 = vadd.f32 %v401, %v403
        %v1436 = vrot.slane %v1435, 4
        %v1437 = vadd.f32 %v1435, %v1436
        %v1438 = vrot.slane %v1437, 2
        %v1439 = vadd.f32 %v1437, %v1438
        %v1440 = vrot.slane %v1439, 1
        %v1441 = vadd.f32 %v1439, %v1440
        %v1442 = vadd.f32 %v402, %v404
        %v1443 = vrot.slane %v1442, 4
        %v1444 = vadd.f32 %v1442, %v1443
        %v1445 = vrot.slane %v1444, 2
        %v1446 = vadd.f32 %v1444, %v1445
        %v1447 = vrot.slane %v1446, 1
        %v1448 = vadd.f32 %v1446, %v1447
        %v1449 = vadd.f32 %v405, %v407
        %v1450 = vrot.slane %v1449, 4
        %v1451 = vadd.f32 %v1449, %v1450
        %v1452 = vrot.slane %v1451, 2
        %v1453 = vadd.f32 %v1451, %v1452
        %v1454 = vrot.slane %v1453, 1
        %v1455 = vadd.f32 %v1453, %v1454
        %v1456 = vadd.f32 %v406, %v408
        %v1457 = vrot.slane %v1456, 4
        %v1458 = vadd.f32 %v1456, %v1457
        %v1459 = vrot.slane %v1458, 2
        %v1460 = vadd.f32 %v1458, %v1459
        %v1461 = vrot.slane %v1460, 1
        %v1462 = vadd.f32 %v1460, %v1461
        %v1463 = vadd.f32 %v409, %v411
        %v1464 = vrot.slane %v1463, 4
        %v1465 = vadd.f32 %v1463, %v1464
        %v1466 = vrot.slane %v1465, 2
        %v1467 = vadd.f32 %v1465, %v1466
        %v1468 = vrot.slane %v1467, 1
        %v1469 = vadd.f32 %v1467, %v1468
        %v1470 = vadd.f32 %v410, %v412
        %v1471 = vrot.slane %v1470, 4
        %v1472 = vadd.f32 %v1470, %v1471
        %v1473 = vrot.slane %v1472, 2
        %v1474 = vadd.f32 %v1472, %v1473
        %v1475 = vrot.slane %v1474, 1
        %v1476 = vadd.f32 %v1474, %v1475
        %v1477 = vadd.f32 %v413, %v415
        %v1478 = vrot.slane %v1477, 4
        %v1479 = vadd.f32 %v1477, %v1478
        %v1480 = vrot.slane %v1479, 2
        %v1481 = vadd.f32 %v1479, %v1480
        %v1482 = vrot.slane %v1481, 1
        %v1483 = vadd.f32 %v1481, %v1482
        %v1484 = vadd.f32 %v414, %v416
        %v1485 = vrot.slane %v1484, 4
        %v1486 = vadd.f32 %v1484, %v1485
        %v1487 = vrot.slane %v1486, 2
        %v1488 = vadd.f32 %v1486, %v1487
        %v1489 = vrot.slane %v1488, 1
        %v1490 = vadd.f32 %v1488, %v1489
        %v1491 = vadd.f32 %v417, %v419
        %v1492 = vrot.slane %v1491, 4
        %v1493 = vadd.f32 %v1491, %v1492
        %v1494 = vrot.slane %v1493, 2
        %v1495 = vadd.f32 %v1493, %v1494
        %v1496 = vrot.slane %v1495, 1
        %v1497 = vadd.f32 %v1495, %v1496
        %v1498 = vadd.f32 %v418, %v420
        %v1499 = vrot.slane %v1498, 4
        %v1500 = vadd.f32 %v1498, %v1499
        %v1501 = vrot.slane %v1500, 2
        %v1502 = vadd.f32 %v1500, %v1501
        %v1503 = vrot.slane %v1502, 1
        %v1504 = vadd.f32 %v1502, %v1503
        %v1505 = vadd.f32 %v421, %v423
        %v1506 = vrot.slane %v1505, 4
        %v1507 = vadd.f32 %v1505, %v1506
        %v1508 = vrot.slane %v1507, 2
        %v1509 = vadd.f32 %v1507, %v1508
        %v1510 = vrot.slane %v1509, 1
        %v1511 = vadd.f32 %v1509, %v1510
        %v1512 = vadd.f32 %v422, %v424
        %v1513 = vrot.slane %v1512, 4
        %v1514 = vadd.f32 %v1512, %v1513
        %v1515 = vrot.slane %v1514, 2
        %v1516 = vadd.f32 %v1514, %v1515
        %v1517 = vrot.slane %v1516, 1
        %v1518 = vadd.f32 %v1516, %v1517
        %v1519 = vadd.f32 %v425, %v427
        %v1520 = vrot.slane %v1519, 4
        %v1521 = vadd.f32 %v1519, %v1520
        %v1522 = vrot.slane %v1521, 2
        %v1523 = vadd.f32 %v1521, %v1522
        %v1524 = vrot.slane %v1523, 1
        %v1525 = vadd.f32 %v1523, %v1524
        %v1526 = vadd.f32 %v426, %v428
        %v1527 = vrot.slane %v1526, 4
        %v1528 = vadd.f32 %v1526, %v1527
        %v1529 = vrot.slane %v1528, 2
        %v1530 = vadd.f32 %v1528, %v1529
        %v1531 = vrot.slane %v1530, 1
        %v1532 = vadd.f32 %v1530, %v1531
        %v1533 = vadd.f32 %v429, %v431
        %v1534 = vrot.slane %v1533, 4
        %v1535 = vadd.f32 %v1533, %v1534
        %v1536 = vrot.slane %v1535, 2
        %v1537 = vadd.f32 %v1535, %v1536
        %v1538 = vrot.slane %v1537, 1
        %v1539 = vadd.f32 %v1537, %v1538
        %v1540 = vadd.f32 %v430, %v432
        %v1541 = vrot.slane %v1540, 4
        %v1542 = vadd.f32 %v1540, %v1541
        %v1543 = vrot.slane %v1542, 2
        %v1544 = vadd.f32 %v1542, %v1543
        %v1545 = vrot.slane %v1544, 1
        %v1546 = vadd.f32 %v1544, %v1545
        %v1547 = vadd.f32 %v433, %v435
        %v1548 = vrot.slane %v1547, 4
        %v1549 = vadd.f32 %v1547, %v1548
        %v1550 = vrot.slane %v1549, 2
        %v1551 = vadd.f32 %v1549, %v1550
        %v1552 = vrot.slane %v1551, 1
        %v1553 = vadd.f32 %v1551, %v1552
        %v1554 = vadd.f32 %v434, %v436
        %v1555 = vrot.slane %v1554, 4
        %v1556 = vadd.f32 %v1554, %v1555
        %v1557 = vrot.slane %v1556, 2
        %v1558 = vadd.f32 %v1556, %v1557
        %v1559 = vrot.slane %v1558, 1
        %v1560 = vadd.f32 %v1558, %v1559
        %v1561 = vadd.f32 %v437, %v439
        %v1562 = vrot.slane %v1561, 4
        %v1563 = vadd.f32 %v1561, %v1562
        %v1564 = vrot.slane %v1563, 2
        %v1565 = vadd.f32 %v1563, %v1564
        %v1566 = vrot.slane %v1565, 1
        %v1567 = vadd.f32 %v1565, %v1566
        %v1568 = vadd.f32 %v438, %v440
        %v1569 = vrot.slane %v1568, 4
        %v1570 = vadd.f32 %v1568, %v1569
        %v1571 = vrot.slane %v1570, 2
        %v1572 = vadd.f32 %v1570, %v1571
        %v1573 = vrot.slane %v1572, 1
        %v1574 = vadd.f32 %v1572, %v1573
        %v1575 = vadd.f32 %v441, %v443
        %v1576 = vrot.slane %v1575, 4
        %v1577 = vadd.f32 %v1575, %v1576
        %v1578 = vrot.slane %v1577, 2
        %v1579 = vadd.f32 %v1577, %v1578
        %v1580 = vrot.slane %v1579, 1
        %v1581 = vadd.f32 %v1579, %v1580
        %v1582 = vadd.f32 %v442, %v444
        %v1583 = vrot.slane %v1582, 4
        %v1584 = vadd.f32 %v1582, %v1583
        %v1585 = vrot.slane %v1584, 2
        %v1586 = vadd.f32 %v1584, %v1585
        %v1587 = vrot.slane %v1586, 1
        %v1588 = vadd.f32 %v1586, %v1587
        %v1653 = vsel %vm1058, %v1161, %v1147
        %v1654 = vsel %vm1060, %v1175, %v1653
        %v1655 = vsel %vm1062, %v1189, %v1654
        %v1656 = vsel %vm1064, %v1203, %v1655
        %v1657 = vsel %vm1066, %v1217, %v1656
        %v1658 = vsel %vm1068, %v1231, %v1657
        %v1659 = vsel %vm1070, %v1245, %v1658
        %v1660 = vsel %vm1058, %v1168, %v1154
        %v1661 = vsel %vm1060, %v1182, %v1660
        %v1662 = vsel %vm1062, %v1196, %v1661
        %v1663 = vsel %vm1064, %v1210, %v1662
        %v1664 = vsel %vm1066, %v1224, %v1663
        %v1665 = vsel %vm1068, %v1238, %v1664
        %v1666 = vsel %vm1070, %v1252, %v1665
        %v1667 = vsel %vm1058, %v1273, %v1259
        %v1668 = vsel %vm1060, %v1287, %v1667
        %v1669 = vsel %vm1062, %v1301, %v1668
        %v1670 = vsel %vm1064, %v1315, %v1669
        %v1671 = vsel %vm1066, %v1329, %v1670
        %v1672 = vsel %vm1068, %v1343, %v1671
        %v1673 = vsel %vm1070, %v1357, %v1672
        %v1674 = vsel %vm1058, %v1280, %v1266
        %v1675 = vsel %vm1060, %v1294, %v1674
        %v1676 = vsel %vm1062, %v1308, %v1675
        %v1677 = vsel %vm1064, %v1322, %v1676
        %v1678 = vsel %vm1066, %v1336, %v1677
        %v1679 = vsel %vm1068, %v1350, %v1678
        %v1680 = vsel %vm1070, %v1364, %v1679
        %v1681 = vsel %vm1058, %v1385, %v1371
        %v1682 = vsel %vm1060, %v1399, %v1681
        %v1683 = vsel %vm1062, %v1413, %v1682
        %v1684 = vsel %vm1064, %v1427, %v1683
        %v1685 = vsel %vm1066, %v1441, %v1684
        %v1686 = vsel %vm1068, %v1455, %v1685
        %v1687 = vsel %vm1070, %v1469, %v1686
        %v1688 = vsel %vm1058, %v1392, %v1378
        %v1689 = vsel %vm1060, %v1406, %v1688
        %v1690 = vsel %vm1062, %v1420, %v1689
        %v1691 = vsel %vm1064, %v1434, %v1690
        %v1692 = vsel %vm1066, %v1448, %v1691
        %v1693 = vsel %vm1068, %v1462, %v1692
        %v1694 = vsel %vm1070, %v1476, %v1693
        %v1695 = vsel %vm1058, %v1497, %v1483
        %v1696 = vsel %vm1060, %v1511, %v1695
        %v1697 = vsel %vm1062, %v1525, %v1696
        %v1698 = vsel %vm1064, %v1539, %v1697
        %v1699 = vsel %vm1066, %v1553, %v1698
        %v1700 = vsel %vm1068, %v1567, %v1699
        %v1701 = vsel %vm1070, %v1581, %v1700
        %v1702 = vsel %vm1058, %v1504, %v1490
        %v1703 = vsel %vm1060, %v1518, %v1702
        %v1704 = vsel %vm1062, %v1532, %v1703
        %v1705 = vsel %vm1064, %v1546, %v1704
        %v1706 = vsel %vm1066, %v1560, %v1705
        %v1707 = vsel %vm1068, %v1574, %v1706
        %v1708 = vsel %vm1070, %v1588, %v1707
        %v1717 = vadd.f32 %v1133, %v1659
        %v1718 = vadd.f32 %v1134, %v1666
        %v1719 = vadd.f32 %v1135, %v1673
        %v1720 = vadd.f32 %v1136, %v1680
        %v1721 = vadd.f32 %v1137, %v1687
        %v1722 = vadd.f32 %v1138, %v1694
        %v1723 = vadd.f32 %v1139, %v1701
        %v1724 = vadd.f32 %v1140, %v1708
        %1725 = vst [vmem:[#allocation3] sm:$0xff] %v1717
        %1726 = vst [vmem:[#allocation3 + $0x8] sm:$0xff] %v1718
        %1727 = vst [vmem:[#allocation3 + $0x10] sm:$0xff] %v1719
        %1728 = vst [vmem:[#allocation3 + $0x18] sm:$0xff] %v1720
        %1729 = vst [vmem:[#allocation3 + $0x20] sm:$0xff] %v1721
        %1730 = vst [vmem:[#allocation3 + $0x28] sm:$0xff] %v1722
        %1731 = vst [vmem:[#allocation3 + $0x30] sm:$0xff] %v1723
        %1732 = vst [vmem:[#allocation3 + $0x38] sm:$0xff] %v1724
        // Predicated region
        $region53: #{tpu_custom_call.1} parent=43 // pred_check
          %p1733 = pneg %p288
        $region54: #{tpu_custom_call.1} parent=43 // pred_check_branch
          %1735 = sbr.rel (%p1733) target = $region56
        $region55: #{tpu_custom_call.1} parent=43 // pred_region
          %v1736 = vld [vmem:[#allocation3] sm:$0xff]
          %v1737 = vld [vmem:[#allocation3 + $0x8] sm:$0xff]
          %v1738 = vld [vmem:[#allocation3 + $0x10] sm:$0xff]
          %v1739 = vld [vmem:[#allocation3 + $0x18] sm:$0xff]
          %v1740 = vld [vmem:[#allocation3 + $0x20] sm:$0xff]
          %v1741 = vld [vmem:[#allocation3 + $0x28] sm:$0xff]
          %v1742 = vld [vmem:[#allocation3 + $0x30] sm:$0xff]
          %v1743 = vld [vmem:[#allocation3 + $0x38] sm:$0xff]
          %v1744 = vld [vmem:[%s1] sm:$0xff]
          %v1745 = vld [vmem:[%s1 + $0x8] sm:$0xff]
          %v1746 = vld [vmem:[%s1 + $0x10] sm:$0xff]
          %v1747 = vld [vmem:[%s1 + $0x18] sm:$0xff]
          %v1748 = vld [vmem:[%s1 + $0x20] sm:$0xff]
          %v1749 = vld [vmem:[%s1 + $0x28] sm:$0xff]
          %v1750 = vld [vmem:[%s1 + $0x30] sm:$0xff]
          %v1751 = vld [vmem:[%s1 + $0x38] sm:$0xff]
          %v1752 = vld [vmem:[%s1 + $0x40] sm:$0xff]
          %v1753 = vld [vmem:[%s1 + $0x48] sm:$0xff]
          %v1754 = vld [vmem:[%s1 + $0x50] sm:$0xff]
          %v1755 = vld [vmem:[%s1 + $0x58] sm:$0xff]
          %v1756 = vld [vmem:[%s1 + $0x60] sm:$0xff]
          %v1757 = vld [vmem:[%s1 + $0x68] sm:$0xff]
          %v1758 = vld [vmem:[%s1 + $0x70] sm:$0xff]
          %v1759 = vld [vmem:[%s1 + $0x78] sm:$0xff]
          %v1760 = vld [vmem:[%s1 + $0x80] sm:$0xff]
          %v1761 = vld [vmem:[%s1 + $0x88] sm:$0xff]
          %v1762 = vld [vmem:[%s1 + $0x90] sm:$0xff]
          %v1763 = vld [vmem:[%s1 + $0x98] sm:$0xff]
          %v1764 = vld [vmem:[%s1 + $0xa0] sm:$0xff]
          %v1765 = vld [vmem:[%s1 + $0xa8] sm:$0xff]
          %v1766 = vld [vmem:[%s1 + $0xb0] sm:$0xff]
          %v1767 = vld [vmem:[%s1 + $0xb8] sm:$0xff]
          %v1768 = vld [vmem:[%s1 + $0xc0] sm:$0xff]
          %v1769 = vld [vmem:[%s1 + $0xc8] sm:$0xff]
          %v1770 = vld [vmem:[%s1 + $0xd0] sm:$0xff]
          %v1771 = vld [vmem:[%s1 + $0xd8] sm:$0xff]
          %v1772 = vld [vmem:[%s1 + $0xe0] sm:$0xff]
          %v1773 = vld [vmem:[%s1 + $0xe8] sm:$0xff]
          %v1774 = vld [vmem:[%s1 + $0xf0] sm:$0xff]
          %v1775 = vld [vmem:[%s1 + $0xf8] sm:$0xff]
          %1776 = vmatprep.subr.mxu0 0.0
          %1777 = vmatpush1.msra.mxu0 %v1759
          %1778 = vmatprep.subr.mxu0 0.0
          %1779 = vmatpush1.msra.mxu0 %v1758
          %1780 = vmatprep.subr.mxu0 0.0
          %1781 = vmatpush1.msra.mxu0 %v1757
          %1782 = vmatprep.subr.mxu0 0.0
          %1783 = vmatpush1.msra.mxu0 %v1756
          %1784 = vmatprep.subr.mxu0 0.0
          %1785 = vmatpush1.msra.mxu0 %v1755
          %1786 = vmatprep.subr.mxu0 0.0
          %1787 = vmatpush1.msra.mxu0 %v1754
          %1788 = vmatprep.subr.mxu0 0.0
          %1789 = vmatpush1.msra.mxu0 %v1753
          %1790 = vmatprep.subr.mxu0 0.0
          %1791 = vmatpush1.msra.mxu0 %v1752
          %1792 = vmatprep.subr.mxu0 0.0
          %1793 = vmatpush1.msra.mxu0 %v1751
          %1794 = vmatprep.subr.mxu0 0.0
          %1795 = vmatpush1.msra.mxu0 %v1750
          %1796 = vmatprep.subr.mxu0 0.0
          %1797 = vmatpush1.msra.mxu0 %v1749
          %1798 = vmatprep.subr.mxu0 0.0
          %1799 = vmatpush1.msra.mxu0 %v1748
          %1800 = vmatprep.subr.mxu0 0.0
          %1801 = vmatpush1.msra.mxu0 %v1747
          %1802 = vmatprep.subr.mxu0 0.0
          %1803 = vmatpush1.msra.mxu0 %v1746
          %1804 = vmatprep.subr.mxu0 0.0
          %1805 = vmatpush1.msra.mxu0 %v1745
          %1806 = vmatprep.subr.mxu0 0.0
          %1807 = vmatpush1.msra.mxu0 %v1744
          %1808 = vmatprep.subr.mxu0 0.0
          %1809 = vmatpush2.msra.mxu0 %v1775
          %1810 = vmatprep.subr.mxu0 0.0
          %1811 = vmatpush2.msra.mxu0 %v1774
          %1812 = vmatprep.subr.mxu0 0.0
          %1813 = vmatpush2.msra.mxu0 %v1773
          %1814 = vmatprep.subr.mxu0 0.0
          %1815 = vmatpush2.msra.mxu0 %v1772
          %1816 = vmatprep.subr.mxu0 0.0
          %1817 = vmatpush2.msra.mxu0 %v1771
          %1818 = vmatprep.subr.mxu0 0.0
          %1819 = vmatpush2.msra.mxu0 %v1770
          %1820 = vmatprep.subr.mxu0 0.0
          %1821 = vmatpush2.msra.mxu0 %v1769
          %1822 = vmatprep.subr.mxu0 0.0
          %1823 = vmatpush2.msra.mxu0 %v1768
          %1824 = vmatprep.subr.mxu0 0.0
          %1825 = vmatpush2.msra.mxu0 %v1767
          %1826 = vmatprep.subr.mxu0 0.0
          %1827 = vmatpush2.msra.mxu0 %v1766
          %1828 = vmatprep.subr.mxu0 0.0
          %1829 = vmatpush2.msra.mxu0 %v1765
          %1830 = vmatprep.subr.mxu0 0.0
          %1831 = vmatpush2.msra.mxu0 %v1764
          %1832 = vmatprep.subr.mxu0 0.0
          %1833 = vmatpush2.msra.mxu0 %v1763
          %1834 = vmatprep.subr.mxu0 0.0
          %1835 = vmatpush2.msra.mxu0 %v1762
          %1836 = vmatprep.subr.mxu0 0.0
          %1837 = vmatpush2.msra.mxu0 %v1761
          %1838 = vmatprep.subr.mxu0 0.0
          %1839 = vmatpush2.msra.mxu0 %v1760
          %1840 = vmatprep.mubr.f32.mxu0 %v1737
          %1841 = vmatmul.mubr.f32.gmra.mxu0 %v1736
          %v1842 = vpop.f32.mrf.mxu0
          %v1843 = vadd.f32 0.0, %v1842
          %v1844 = vpop.f32.mrf.mxu0
          %1845 = vmatprep.mubr.f32.mxu0 %v1739
          %1846 = vmatmul.mubr.f32.gmra.mxu0 %v1738
          %v1847 = vpop.f32.mrf.mxu0
          %v1848 = vadd.f32 0.0, %v1847
          %v1849 = vpop.f32.mrf.mxu0
          %1850 = vmatprep.mubr.f32.mxu0 %v1741
          %1851 = vmatmul.mubr.f32.gmra.mxu0 %v1740
          %v1852 = vpop.f32.mrf.mxu0
          %v1853 = vadd.f32 0.0, %v1852
          %v1854 = vpop.f32.mrf.mxu0
          %1855 = vmatprep.mubr.f32.mxu0 %v1743
          %1856 = vmatmul.mubr.f32.gmra.mxu0 %v1742
          %v1857 = vpop.f32.mrf.mxu0
          %v1858 = vadd.f32 0.0, %v1857
          %v1859 = vpop.f32.mrf.mxu0
          %1860 = vdwg.mxu0
          %1861 = vxpose.xlu0.b32.start [1/16] %v1843, 128
          %1862 = vxpose.xlu0.b32.cont [2/16] %v1848, 128
          %1863 = vxpose.xlu0.b32.cont [3/16] %v1853, 128
          %1864 = vxpose.xlu0.b32.cont [4/16] %v1858, 128
          %1865 = vxpose.xlu0.b32.cont [5/16] 0.0, 128
          %1866 = vxpose.xlu0.b32.cont [6/16] 0.0, 128
          %1867 = vxpose.xlu0.b32.cont [7/16] 0.0, 128
          %1868 = vxpose.xlu0.b32.cont [8/16] 0.0, 128
          %1869 = vxpose.xlu0.b32.cont [9/16] 0.0, 128
          %1870 = vxpose.xlu0.b32.cont [10/16] 0.0, 128
          %1871 = vxpose.xlu0.b32.cont [11/16] 0.0, 128
          %1872 = vxpose.xlu0.b32.cont [12/16] 0.0, 128
          %1873 = vxpose.xlu0.b32.cont [13/16] 0.0, 128
          %1874 = vxpose.xlu0.b32.cont [14/16] 0.0, 128
          %1875 = vxpose.xlu0.b32.cont [15/16] 0.0, 128
          %1876 = vxpose.xlu0.b32.end [16/16] 0.0, 128
          %v1877 = vpop.trf.xlu0
          %v1878 = vpop.trf.xlu0
          %v1879 = vpop.trf.xlu0
          %v1880 = vpop.trf.xlu0
          %v1881 = vpop.trf.xlu0
          %v1882 = vpop.trf.xlu0
          %v1883 = vpop.trf.xlu0
          %v1884 = vpop.trf.xlu0
          %v1885 = vpop.trf.xlu0
          %v1886 = vpop.trf.xlu0
          %v1887 = vpop.trf.xlu0
          %v1888 = vpop.trf.xlu0
          %v1889 = vpop.trf.xlu0
          %v1890 = vpop.trf.xlu0
          %v1891 = vpop.trf.xlu0
          %v1892 = vpop.trf.xlu0
          %1893 = vst.msk [vmem:[#allocation2 + $0x10] sm:$0xff] %vm1130, %v1877
          %1894 = vst.msk [vmem:[#allocation2 + $0x18] sm:$0xff] %vm1130, %v1878
          %1895 = vst.msk [vmem:[#allocation2 + $0x20] sm:$0xff] %vm1130, %v1879
          %1896 = vst.msk [vmem:[#allocation2 + $0x28] sm:$0xff] %vm1130, %v1880
          %v1897 = vld [vmem:[#allocation2] sm:$0xff]
          %v1898 = vld [vmem:[#allocation2 + $0x8] sm:$0xff]
          %v1899 = vld [vmem:[#allocation2 + $0x10] sm:$0xff]
          %v1900 = vld [vmem:[#allocation2 + $0x18] sm:$0xff]
          %v1901 = vld [vmem:[#allocation2 + $0x20] sm:$0xff]
          %v1902 = vld [vmem:[#allocation2 + $0x28] sm:$0xff]
          %v1903 = vld [vmem:[#allocation2 + $0x30] sm:$0xff]
          %v1904 = vld [vmem:[#allocation2 + $0x38] sm:$0xff]
          %v1905 = vld [vmem:[#allocation2 + $0x40] sm:$0xff]
          %v1906 = vld [vmem:[#allocation2 + $0x48] sm:$0xff]
          %v1907 = vld [vmem:[#allocation2 + $0x50] sm:$0xff]
          %v1908 = vld [vmem:[#allocation2 + $0x58] sm:$0xff]
          %v1909 = vld [vmem:[#allocation2 + $0x60] sm:$0xff]
          %v1910 = vld [vmem:[#allocation2 + $0x68] sm:$0xff]
          %v1911 = vld [vmem:[#allocation2 + $0x70] sm:$0xff]
          %v1912 = vld [vmem:[#allocation2 + $0x78] sm:$0xff]
          %v1913 = vld [vmem:[%s2] sm:$0xff]
          %v1914 = vld [vmem:[%s2 + $0x8] sm:$0xff]
          %v1915 = vld [vmem:[%s2 + $0x10] sm:$0xff]
          %v1916 = vld [vmem:[%s2 + $0x18] sm:$0xff]
          %v1917 = vld [vmem:[%s3] sm:$0x1]
          %v1919 = vlaneseq
          %v1920 = vshrl.u32 %v1919, 7
          %v1921 = vsub.s32 0, %v1920
          %v1922 = vrot.slane %v1917, %v1921
          %v1925 = vsel %vm1130, %v1897, 0
          %v1928 = vsel %vm1130, %v1898, 0
          %v1931 = vsel %vm1130, %v1899, 0
          %v1934 = vsel %vm1130, %v1900, 0
          %v1937 = vsel %vm1130, %v1901, 0
          %v1940 = vsel %vm1130, %v1902, 0
          %v1943 = vsel %vm1130, %v1903, 0
          %v1946 = vsel %vm1130, %v1904, 0
          %v1949 = vsel %vm1130, %v1905, 0
          %v1952 = vsel %vm1130, %v1906, 0
          %v1955 = vsel %vm1130, %v1907, 0
          %v1958 = vsel %vm1130, %v1908, 0
          %v1961 = vsel %vm1130, %v1909, 0
          %v1964 = vsel %vm1130, %v1910, 0
          %v1967 = vsel %vm1130, %v1911, 0
          %v1970 = vsel %vm1130, %v1912, 0
          %1972 = vmatprep.subr.mxu0 0.0
          %1973 = vmatpush1.msra.mxu0 0.0
          %1974 = vmatprep.subr.mxu0 0.0
          %1975 = vmatpush1.msra.mxu0 0.0
          %1976 = vmatprep.subr.mxu0 0.0
          %1977 = vmatpush1.msra.mxu0 0.0
          %1978 = vmatprep.subr.mxu0 0.0
          %1979 = vmatpush1.msra.mxu0 0.0
          %1980 = vmatprep.subr.mxu0 0.0
          %1981 = vmatpush1.msra.mxu0 0.0
          %1982 = vmatprep.subr.mxu0 0.0
          %1983 = vmatpush1.msra.mxu0 0.0
          %1984 = vmatprep.subr.mxu0 0.0
          %1985 = vmatpush1.msra.mxu0 0.0
          %1986 = vmatprep.subr.mxu0 0.0
          %1987 = vmatpush1.msra.mxu0 0.0
          %1988 = vmatprep.subr.mxu0 0.0
          %1989 = vmatpush1.msra.mxu0 0.0
          %1990 = vmatprep.subr.mxu0 0.0
          %1991 = vmatpush1.msra.mxu0 0.0
          %1992 = vmatprep.subr.mxu0 0.0
          %1993 = vmatpush1.msra.mxu0 0.0
          %1994 = vmatprep.subr.mxu0 0.0
          %1995 = vmatpush1.msra.mxu0 0.0
          %1996 = vmatprep.subr.mxu0 0.0
          %1997 = vmatpush1.msra.mxu0 %v1916
          %1998 = vmatprep.subr.mxu0 0.0
          %1999 = vmatpush1.msra.mxu0 %v1915
          %2000 = vmatprep.subr.mxu0 0.0
          %2001 = vmatpush1.msra.mxu0 %v1914
          %2002 = vmatprep.subr.mxu0 0.0
          %2003 = vmatpush1.msra.mxu0 %v1913
          %2004 = vmatprep.subr.mxu0 0.0
          %2005 = vmatpush2.msra.mxu0 0.0
          %2006 = vmatprep.subr.mxu0 0.0
          %2007 = vmatpush2.msra.mxu0 0.0
          %2008 = vmatprep.subr.mxu0 0.0
          %2009 = vmatpush2.msra.mxu0 0.0
          %2010 = vmatprep.subr.mxu0 0.0
          %2011 = vmatpush2.msra.mxu0 0.0
          %2012 = vmatprep.subr.mxu0 0.0
          %2013 = vmatpush2.msra.mxu0 0.0
          %2014 = vmatprep.subr.mxu0 0.0
          %2015 = vmatpush2.msra.mxu0 0.0
          %2016 = vmatprep.subr.mxu0 0.0
          %2017 = vmatpush2.msra.mxu0 0.0
          %2018 = vmatprep.subr.mxu0 0.0
          %2019 = vmatpush2.msra.mxu0 0.0
          %2020 = vmatprep.subr.mxu0 0.0
          %2021 = vmatpush2.msra.mxu0 0.0
          %2022 = vmatprep.subr.mxu0 0.0
          %2023 = vmatpush2.msra.mxu0 0.0
          %2024 = vmatprep.subr.mxu0 0.0
          %2025 = vmatpush2.msra.mxu0 0.0
          %2026 = vmatprep.subr.mxu0 0.0
          %2027 = vmatpush2.msra.mxu0 0.0
          %2028 = vmatprep.subr.mxu0 0.0
          %2029 = vmatpush2.msra.mxu0 0.0
          %2030 = vmatprep.subr.mxu0 0.0
          %2031 = vmatpush2.msra.mxu0 0.0
          %2032 = vmatprep.subr.mxu0 0.0
          %2033 = vmatpush2.msra.mxu0 0.0
          %2034 = vmatprep.subr.mxu0 0.0
          %2035 = vmatpush2.msra.mxu0 0.0
          %2036 = vmatprep.mubr.f32.mxu0 0.0
          %2037 = vmatmul.mubr.f32.gmra.mxu0 %v1925
          %v2038 = vpop.f32.mrf.mxu0
          %v2039 = vadd.f32 %v1922, %v2038
          %v2040 = vpop.f32.mrf.mxu0
          %2041 = vmatprep.mubr.f32.mxu0 0.0
          %2042 = vmatmul.mubr.f32.gmra.mxu0 %v1928
          %v2043 = vpop.f32.mrf.mxu0
          %v2044 = vadd.f32 %v1922, %v2043
          %v2045 = vpop.f32.mrf.mxu0
          %2046 = vmatprep.mubr.f32.mxu0 0.0
          %2047 = vmatmul.mubr.f32.gmra.mxu0 %v1931
          %v2048 = vpop.f32.mrf.mxu0
          %v2049 = vadd.f32 %v1922, %v2048
          %v2050 = vpop.f32.mrf.mxu0
          %2051 = vmatprep.mubr.f32.mxu0 0.0
          %2052 = vmatmul.mubr.f32.gmra.mxu0 %v1934
          %v2053 = vpop.f32.mrf.mxu0
          %v2054 = vadd.f32 %v1922, %v2053
          %v2055 = vpop.f32.mrf.mxu0
          %2056 = vmatprep.mubr.f32.mxu0 0.0
          %2057 = vmatmul.mubr.f32.gmra.mxu0 %v1937
          %v2058 = vpop.f32.mrf.mxu0
          %v2059 = vadd.f32 %v1922, %v2058
          %v2060 = vpop.f32.mrf.mxu0
          %2061 = vmatprep.mubr.f32.mxu0 0.0
          %2062 = vmatmul.mubr.f32.gmra.mxu0 %v1940
          %v2063 = vpop.f32.mrf.mxu0
          %v2064 = vadd.f32 %v1922, %v2063
          %v2065 = vpop.f32.mrf.mxu0
          %2066 = vmatprep.mubr.f32.mxu0 0.0
          %2067 = vmatmul.mubr.f32.gmra.mxu0 %v1943
          %v2068 = vpop.f32.mrf.mxu0
          %v2069 = vadd.f32 %v1922, %v2068
          %v2070 = vpop.f32.mrf.mxu0
          %2071 = vmatprep.mubr.f32.mxu0 0.0
          %2072 = vmatmul.mubr.f32.gmra.mxu0 %v1946
          %v2073 = vpop.f32.mrf.mxu0
          %v2074 = vadd.f32 %v1922, %v2073
          %v2075 = vpop.f32.mrf.mxu0
          %2076 = vmatprep.mubr.f32.mxu0 0.0
          %2077 = vmatmul.mubr.f32.gmra.mxu0 %v1949
          %v2078 = vpop.f32.mrf.mxu0
          %v2079 = vadd.f32 %v1922, %v2078
          %v2080 = vpop.f32.mrf.mxu0
          %2081 = vmatprep.mubr.f32.mxu0 0.0
          %2082 = vmatmul.mubr.f32.gmra.mxu0 %v1952
          %v2083 = vpop.f32.mrf.mxu0
          %v2084 = vadd.f32 %v1922, %v2083
          %v2085 = vpop.f32.mrf.mxu0
          %2086 = vmatprep.mubr.f32.mxu0 0.0
          %2087 = vmatmul.mubr.f32.gmra.mxu0 %v1955
          %v2088 = vpop.f32.mrf.mxu0
          %v2089 = vadd.f32 %v1922, %v2088
          %v2090 = vpop.f32.mrf.mxu0
          %2091 = vmatprep.mubr.f32.mxu0 0.0
          %2092 = vmatmul.mubr.f32.gmra.mxu0 %v1958
          %v2093 = vpop.f32.mrf.mxu0
          %v2094 = vadd.f32 %v1922, %v2093
          %v2095 = vpop.f32.mrf.mxu0
          %2096 = vmatprep.mubr.f32.mxu0 0.0
          %2097 = vmatmul.mubr.f32.gmra.mxu0 %v1961
          %v2098 = vpop.f32.mrf.mxu0
          %v2099 = vadd.f32 %v1922, %v2098
          %v2100 = vpop.f32.mrf.mxu0
          %2101 = vmatprep.mubr.f32.mxu0 0.0
          %2102 = vmatmul.mubr.f32.gmra.mxu0 %v1964
          %v2103 = vpop.f32.mrf.mxu0
          %v2104 = vadd.f32 %v1922, %v2103
          %v2105 = vpop.f32.mrf.mxu0
          %2106 = vmatprep.mubr.f32.mxu0 0.0
          %2107 = vmatmul.mubr.f32.gmra.mxu0 %v1967
          %v2108 = vpop.f32.mrf.mxu0
          %v2109 = vadd.f32 %v1922, %v2108
          %v2110 = vpop.f32.mrf.mxu0
          %2111 = vmatprep.mubr.f32.mxu0 0.0
          %2112 = vmatmul.mubr.f32.gmra.mxu0 %v1970
          %v2113 = vpop.f32.mrf.mxu0
          %v2114 = vadd.f32 %v1922, %v2113
          %v2115 = vpop.f32.mrf.mxu0
          %2116 = vdwg.mxu0
          %v2117 = vlaneseq
          %v2118 = vshrl.u32 %v2117, 7
          %v2119 = vadd.s32 %v2118, 8
          %v2120 = vadd.s32 %v2118, 16
          %v2121 = vadd.s32 %v2118, 24
          %v2122 = vadd.s32 %v2118, 32
          %v2123 = vadd.s32 %v2118, 40
          %v2124 = vadd.s32 %v2118, 48
          %v2125 = vadd.s32 %v2118, 56
          %v2126 = vadd.s32 %v2118, 64
          %v2127 = vadd.s32 %v2118, 72
          %v2128 = vadd.s32 %v2118, 80
          %v2129 = vadd.s32 %v2118, 88
          %v2130 = vadd.s32 %v2118, 96
          %v2131 = vadd.s32 %v2118, 104
          %v2132 = vadd.s32 %v2118, 112
          %v2133 = vadd.s32 %v2118, 120
          %vm2134 = vcmp.lt.s32.totalorder %v2118, 48
          %vm2135 = vcmp.lt.s32.totalorder %v2119, 48
          %vm2136 = vcmp.lt.s32.totalorder %v2120, 48
          %vm2137 = vcmp.lt.s32.totalorder %v2121, 48
          %vm2138 = vcmp.lt.s32.totalorder %v2122, 48
          %vm2139 = vcmp.lt.s32.totalorder %v2123, 48
          %vm2140 = vcmp.lt.s32.totalorder %v2124, 48
          %vm2141 = vcmp.lt.s32.totalorder %v2125, 48
          %vm2142 = vcmp.lt.s32.totalorder %v2126, 48
          %vm2143 = vcmp.lt.s32.totalorder %v2127, 48
          %vm2144 = vcmp.lt.s32.totalorder %v2128, 48
          %vm2145 = vcmp.lt.s32.totalorder %v2129, 48
          %vm2146 = vcmp.lt.s32.totalorder %v2130, 48
          %vm2147 = vcmp.lt.s32.totalorder %v2131, 48
          %vm2148 = vcmp.lt.s32.totalorder %v2132, 48
          %vm2149 = vcmp.lt.s32.totalorder %v2133, 48
          %v2150 = vsel %vm2134, %v2039, 0.0
          %v2151 = vsel %vm2135, %v2044, 0.0
          %v2152 = vsel %vm2136, %v2049, 0.0
          %v2153 = vsel %vm2137, %v2054, 0.0
          %v2154 = vsel %vm2138, %v2059, 0.0
          %v2155 = vsel %vm2139, %v2064, 0.0
          %v2156 = vsel %vm2140, %v2069, 0.0
          %v2157 = vsel %vm2141, %v2074, 0.0
          %v2158 = vsel %vm2142, %v2079, 0.0
          %v2159 = vsel %vm2143, %v2084, 0.0
          %v2160 = vsel %vm2144, %v2089, 0.0
          %v2161 = vsel %vm2145, %v2094, 0.0
          %v2162 = vsel %vm2146, %v2099, 0.0
          %v2163 = vsel %vm2147, %v2104, 0.0
          %v2164 = vsel %vm2148, %v2109, 0.0
          %v2165 = vsel %vm2149, %v2114, 0.0
          %v2166 = vadd.f32 %v2150, %v2151
          %v2167 = vadd.f32 %v2166, %v2152
          %v2168 = vadd.f32 %v2167, %v2153
          %v2169 = vadd.f32 %v2168, %v2154
          %v2170 = vadd.f32 %v2169, %v2155
          %v2171 = vadd.f32 %v2170, %v2156
          %v2172 = vadd.f32 %v2171, %v2157
          %v2173 = vadd.f32 %v2172, %v2158
          %v2174 = vadd.f32 %v2173, %v2159
          %v2175 = vadd.f32 %v2174, %v2160
          %v2176 = vadd.f32 %v2175, %v2161
          %v2177 = vadd.f32 %v2176, %v2162
          %v2178 = vadd.f32 %v2177, %v2163
          %v2179 = vadd.f32 %v2178, %v2164
          %v2180 = vadd.f32 %v2179, %v2165
          %v2181 = vrot.slane %v2180, 4
          %v2182 = vadd.f32 %v2180, %v2181
          %v2183 = vrot.slane %v2182, 2
          %v2184 = vadd.f32 %v2182, %v2183
          %v2185 = vrot.slane %v2184, 1
          %v2186 = vadd.f32 %v2184, %v2185
          %v2187 = vmul.f32 %v2186, 0.020833334
          %v2188 = vsub.f32 %v2039, %v2187
          %v2189 = vsub.f32 %v2044, %v2187
          %v2190 = vsub.f32 %v2049, %v2187
          %v2191 = vsub.f32 %v2054, %v2187
          %v2192 = vsub.f32 %v2059, %v2187
          %v2193 = vsub.f32 %v2064, %v2187
          %v2194 = vsub.f32 %v2069, %v2187
          %v2195 = vsub.f32 %v2074, %v2187
          %v2196 = vsub.f32 %v2079, %v2187
          %v2197 = vsub.f32 %v2084, %v2187
          %v2198 = vsub.f32 %v2089, %v2187
          %v2199 = vsub.f32 %v2094, %v2187
          %v2200 = vsub.f32 %v2099, %v2187
          %v2201 = vsub.f32 %v2104, %v2187
          %v2202 = vsub.f32 %v2109, %v2187
          %v2203 = vsub.f32 %v2114, %v2187
          %v2204 = vmul.f32 %v2188, %v2188
          %v2205 = vmul.f32 %v2189, %v2189
          %v2206 = vmul.f32 %v2190, %v2190
          %v2207 = vmul.f32 %v2191, %v2191
          %v2208 = vmul.f32 %v2192, %v2192
          %v2209 = vmul.f32 %v2193, %v2193
          %v2210 = vmul.f32 %v2194, %v2194
          %v2211 = vmul.f32 %v2195, %v2195
          %v2212 = vmul.f32 %v2196, %v2196
          %v2213 = vmul.f32 %v2197, %v2197
          %v2214 = vmul.f32 %v2198, %v2198
          %v2215 = vmul.f32 %v2199, %v2199
          %v2216 = vmul.f32 %v2200, %v2200
          %v2217 = vmul.f32 %v2201, %v2201
          %v2218 = vmul.f32 %v2202, %v2202
          %v2219 = vmul.f32 %v2203, %v2203
          %v2220 = vsel %vm2134, %v2204, 0.0
          %v2221 = vsel %vm2135, %v2205, 0.0
          %v2222 = vsel %vm2136, %v2206, 0.0
          %v2223 = vsel %vm2137, %v2207, 0.0
          %v2224 = vsel %vm2138, %v2208, 0.0
          %v2225 = vsel %vm2139, %v2209, 0.0
          %v2226 = vsel %vm2140, %v2210, 0.0
          %v2227 = vsel %vm2141, %v2211, 0.0
          %v2228 = vsel %vm2142, %v2212, 0.0
          %v2229 = vsel %vm2143, %v2213, 0.0
          %v2230 = vsel %vm2144, %v2214, 0.0
          %v2231 = vsel %vm2145, %v2215, 0.0
          %v2232 = vsel %vm2146, %v2216, 0.0
          %v2233 = vsel %vm2147, %v2217, 0.0
          %v2234 = vsel %vm2148, %v2218, 0.0
          %v2235 = vsel %vm2149, %v2219, 0.0
          %v2236 = vadd.f32 %v2220, %v2221
          %v2237 = vadd.f32 %v2236, %v2222
          %v2238 = vadd.f32 %v2237, %v2223
          %v2239 = vadd.f32 %v2238, %v2224
          %v2240 = vadd.f32 %v2239, %v2225
          %v2241 = vadd.f32 %v2240, %v2226
          %v2242 = vadd.f32 %v2241, %v2227
          %v2243 = vadd.f32 %v2242, %v2228
          %v2244 = vadd.f32 %v2243, %v2229
          %v2245 = vadd.f32 %v2244, %v2230
          %v2246 = vadd.f32 %v2245, %v2231
          %v2247 = vadd.f32 %v2246, %v2232
          %v2248 = vadd.f32 %v2247, %v2233
          %v2249 = vadd.f32 %v2248, %v2234
          %v2250 = vadd.f32 %v2249, %v2235
          %v2251 = vrot.slane %v2250, 4
          %v2252 = vadd.f32 %v2250, %v2251
          %v2253 = vrot.slane %v2252, 2
          %v2254 = vadd.f32 %v2252, %v2253
          %v2255 = vrot.slane %v2254, 1
          %v2256 = vadd.f32 %v2254, %v2255
          %v2257 = vmul.f32 %v2256, 0.020833334
          %v2258 = vadd.f32 %v2257, 1e-05
          %v2259 = vrsqrt.pop %v2258
          %v2260 = vmul.f32 %v2188, %v2259
          %v2261 = vmul.f32 %v2189, %v2259
          %v2262 = vmul.f32 %v2190, %v2259
          %v2263 = vmul.f32 %v2191, %v2259
          %v2264 = vmul.f32 %v2192, %v2259
          %v2265 = vmul.f32 %v2193, %v2259
          %v2266 = vmul.f32 %v2194, %v2259
          %v2267 = vmul.f32 %v2195, %v2259
          %v2268 = vmul.f32 %v2196, %v2259
          %v2269 = vmul.f32 %v2197, %v2259
          %v2270 = vmul.f32 %v2198, %v2259
          %v2271 = vmul.f32 %v2199, %v2259
          %v2272 = vmul.f32 %v2200, %v2259
          %v2273 = vmul.f32 %v2201, %v2259
          %v2274 = vmul.f32 %v2202, %v2259
          %v2275 = vmul.f32 %v2203, %v2259
          %vm2276 = vcmp.ge.f32.partialorder %v2260, 0.0
          %vm2277 = vcmp.ge.f32.partialorder %v2261, 0.0
          %vm2278 = vcmp.ge.f32.partialorder %v2262, 0.0
          %vm2279 = vcmp.ge.f32.partialorder %v2263, 0.0
          %vm2280 = vcmp.ge.f32.partialorder %v2264, 0.0
          %vm2281 = vcmp.ge.f32.partialorder %v2265, 0.0
          %vm2282 = vcmp.ge.f32.partialorder %v2266, 0.0
          %vm2283 = vcmp.ge.f32.partialorder %v2267, 0.0
          %vm2284 = vcmp.ge.f32.partialorder %v2268, 0.0
          %vm2285 = vcmp.ge.f32.partialorder %v2269, 0.0
          %vm2286 = vcmp.ge.f32.partialorder %v2270, 0.0
          %vm2287 = vcmp.ge.f32.partialorder %v2271, 0.0
          %vm2288 = vcmp.ge.f32.partialorder %v2272, 0.0
          %vm2289 = vcmp.ge.f32.partialorder %v2273, 0.0
          %vm2290 = vcmp.ge.f32.partialorder %v2274, 0.0
          %vm2291 = vcmp.ge.f32.partialorder %v2275, 0.0
          %v2292 = vmul.f32 %v2260, 0.01
          %v2293 = vmul.f32 %v2261, 0.01
          %v2294 = vmul.f32 %v2262, 0.01
          %v2295 = vmul.f32 %v2263, 0.01
          %v2296 = vmul.f32 %v2264, 0.01
          %v2297 = vmul.f32 %v2265, 0.01
          %v2298 = vmul.f32 %v2266, 0.01
          %v2299 = vmul.f32 %v2267, 0.01
          %v2300 = vmul.f32 %v2268, 0.01
          %v2301 = vmul.f32 %v2269, 0.01
          %v2302 = vmul.f32 %v2270, 0.01
          %v2303 = vmul.f32 %v2271, 0.01
          %v2304 = vmul.f32 %v2272, 0.01
          %v2305 = vmul.f32 %v2273, 0.01
          %v2306 = vmul.f32 %v2274, 0.01
          %v2307 = vmul.f32 %v2275, 0.01
          %v2308 = vsel %vm2276, %v2260, %v2292
          %v2309 = vsel %vm2277, %v2261, %v2293
          %v2310 = vsel %vm2278, %v2262, %v2294
          %v2311 = vsel %vm2279, %v2263, %v2295
          %v2312 = vsel %vm2280, %v2264, %v2296
          %v2313 = vsel %vm2281, %v2265, %v2297
          %v2314 = vsel %vm2282, %v2266, %v2298
          %v2315 = vsel %vm2283, %v2267, %v2299
          %v2316 = vsel %vm2284, %v2268, %v2300
          %v2317 = vsel %vm2285, %v2269, %v2301
          %v2318 = vsel %vm2286, %v2270, %v2302
          %v2319 = vsel %vm2287, %v2271, %v2303
          %v2320 = vsel %vm2288, %v2272, %v2304
          %v2321 = vsel %vm2289, %v2273, %v2305
          %v2322 = vsel %vm2290, %v2274, %v2306
          %v2323 = vsel %vm2291, %v2275, %v2307
          %v2324 = vld [vmem:[%s4] sm:$0xff]
          %v2325 = vld [vmem:[%s4 + $0x8] sm:$0xff]
          %v2326 = vld [vmem:[%s4 + $0x10] sm:$0xff]
          %v2327 = vld [vmem:[%s4 + $0x18] sm:$0xff]
          %v2328 = vld [vmem:[%s4 + $0x20] sm:$0xff]
          %v2329 = vld [vmem:[%s4 + $0x28] sm:$0xff]
          %v2330 = vld [vmem:[%s4 + $0x30] sm:$0xff]
          %v2331 = vld [vmem:[%s4 + $0x38] sm:$0xff]
          %v2332 = vld [vmem:[%s4 + $0x40] sm:$0xff]
          %v2333 = vld [vmem:[%s4 + $0x48] sm:$0xff]
          %v2334 = vld [vmem:[%s4 + $0x50] sm:$0xff]
          %v2335 = vld [vmem:[%s4 + $0x58] sm:$0xff]
          %v2336 = vld [vmem:[%s4 + $0x60] sm:$0xff]
          %v2337 = vld [vmem:[%s4 + $0x68] sm:$0xff]
          %v2338 = vld [vmem:[%s4 + $0x70] sm:$0xff]
          %v2339 = vld [vmem:[%s4 + $0x78] sm:$0xff]
          %v2340 = vld [vmem:[%s5] sm:$0x1]
          %v2342 = vlaneseq
          %v2343 = vshrl.u32 %v2342, 7
          %v2344 = vsub.s32 0, %v2343
          %v2345 = vrot.slane %v2340, %v2344
          %2347 = vmatprep.subr.mxu0 0.0
          %2348 = vmatpush1.msra.mxu0 %v2339
          %2349 = vmatprep.subr.mxu0 0.0
          %2350 = vmatpush1.msra.mxu0 %v2338
          %2351 = vmatprep.subr.mxu0 0.0
          %2352 = vmatpush1.msra.mxu0 %v2337
          %2353 = vmatprep.subr.mxu0 0.0
          %2354 = vmatpush1.msra.mxu0 %v2336
          %2355 = vmatprep.subr.mxu0 0.0
          %2356 = vmatpush1.msra.mxu0 %v2335
          %2357 = vmatprep.subr.mxu0 0.0
          %2358 = vmatpush1.msra.mxu0 %v2334
          %2359 = vmatprep.subr.mxu0 0.0
          %2360 = vmatpush1.msra.mxu0 %v2333
          %2361 = vmatprep.subr.mxu0 0.0
          %2362 = vmatpush1.msra.mxu0 %v2332
          %2363 = vmatprep.subr.mxu0 0.0
          %2364 = vmatpush1.msra.mxu0 %v2331
          %2365 = vmatprep.subr.mxu0 0.0
          %2366 = vmatpush1.msra.mxu0 %v2330
          %2367 = vmatprep.subr.mxu0 0.0
          %2368 = vmatpush1.msra.mxu0 %v2329
          %2369 = vmatprep.subr.mxu0 0.0
          %2370 = vmatpush1.msra.mxu0 %v2328
          %2371 = vmatprep.subr.mxu0 0.0
          %2372 = vmatpush1.msra.mxu0 %v2327
          %2373 = vmatprep.subr.mxu0 0.0
          %2374 = vmatpush1.msra.mxu0 %v2326
          %2375 = vmatprep.subr.mxu0 0.0
          %2376 = vmatpush1.msra.mxu0 %v2325
          %2377 = vmatprep.subr.mxu0 0.0
          %2378 = vmatpush1.msra.mxu0 %v2324
          %2379 = vmatprep.subr.mxu0 0.0
          %2380 = vmatpush2.msra.mxu0 0.0
          %2381 = vmatprep.subr.mxu0 0.0
          %2382 = vmatpush2.msra.mxu0 0.0
          %2383 = vmatprep.subr.mxu0 0.0
          %2384 = vmatpush2.msra.mxu0 0.0
          %2385 = vmatprep.subr.mxu0 0.0
          %2386 = vmatpush2.msra.mxu0 0.0
          %2387 = vmatprep.subr.mxu0 0.0
          %2388 = vmatpush2.msra.mxu0 0.0
          %2389 = vmatprep.subr.mxu0 0.0
          %2390 = vmatpush2.msra.mxu0 0.0
          %2391 = vmatprep.subr.mxu0 0.0
          %2392 = vmatpush2.msra.mxu0 0.0
          %2393 = vmatprep.subr.mxu0 0.0
          %2394 = vmatpush2.msra.mxu0 0.0
          %2395 = vmatprep.subr.mxu0 0.0
          %2396 = vmatpush2.msra.mxu0 0.0
          %2397 = vmatprep.subr.mxu0 0.0
          %2398 = vmatpush2.msra.mxu0 0.0
          %2399 = vmatprep.subr.mxu0 0.0
          %2400 = vmatpush2.msra.mxu0 0.0
          %2401 = vmatprep.subr.mxu0 0.0
          %2402 = vmatpush2.msra.mxu0 0.0
          %2403 = vmatprep.subr.mxu0 0.0
          %2404 = vmatpush2.msra.mxu0 0.0
          %2405 = vmatprep.subr.mxu0 0.0
          %2406 = vmatpush2.msra.mxu0 0.0
          %2407 = vmatprep.subr.mxu0 0.0
          %2408 = vmatpush2.msra.mxu0 0.0
          %2409 = vmatprep.subr.mxu0 0.0
          %2410 = vmatpush2.msra.mxu0 0.0
          %2411 = vmatprep.mubr.f32.mxu0 0.0
          %2412 = vmatmul.mubr.f32.gmra.mxu0 %v2308
          %v2413 = vpop.f32.mrf.mxu0
          %v2414 = vadd.f32 %v2345, %v2413
          %v2415 = vpop.f32.mrf.mxu0
          %2416 = vmatprep.mubr.f32.mxu0 0.0
          %2417 = vmatmul.mubr.f32.gmra.mxu0 %v2309
          %v2418 = vpop.f32.mrf.mxu0
          %v2419 = vadd.f32 %v2345, %v2418
          %v2420 = vpop.f32.mrf.mxu0
          %2421 = vmatprep.mubr.f32.mxu0 0.0
          %2422 = vmatmul.mubr.f32.gmra.mxu0 %v2310
          %v2423 = vpop.f32.mrf.mxu0
          %v2424 = vadd.f32 %v2345, %v2423
          %v2425 = vpop.f32.mrf.mxu0
          %2426 = vmatprep.mubr.f32.mxu0 0.0
          %2427 = vmatmul.mubr.f32.gmra.mxu0 %v2311
          %v2428 = vpop.f32.mrf.mxu0
          %v2429 = vadd.f32 %v2345, %v2428
          %v2430 = vpop.f32.mrf.mxu0
          %2431 = vmatprep.mubr.f32.mxu0 0.0
          %2432 = vmatmul.mubr.f32.gmra.mxu0 %v2312
          %v2433 = vpop.f32.mrf.mxu0
          %v2434 = vadd.f32 %v2345, %v2433
          %v2435 = vpop.f32.mrf.mxu0
          %2436 = vmatprep.mubr.f32.mxu0 0.0
          %2437 = vmatmul.mubr.f32.gmra.mxu0 %v2313
          %v2438 = vpop.f32.mrf.mxu0
          %v2439 = vadd.f32 %v2345, %v2438
          %v2440 = vpop.f32.mrf.mxu0
          %2441 = vmatprep.mubr.f32.mxu0 0.0
          %2442 = vmatmul.mubr.f32.gmra.mxu0 %v2314
          %v2443 = vpop.f32.mrf.mxu0
          %v2444 = vadd.f32 %v2345, %v2443
          %v2445 = vpop.f32.mrf.mxu0
          %2446 = vmatprep.mubr.f32.mxu0 0.0
          %2447 = vmatmul.mubr.f32.gmra.mxu0 %v2315
          %v2448 = vpop.f32.mrf.mxu0
          %v2449 = vadd.f32 %v2345, %v2448
          %v2450 = vpop.f32.mrf.mxu0
          %2451 = vmatprep.mubr.f32.mxu0 0.0
          %2452 = vmatmul.mubr.f32.gmra.mxu0 %v2316
          %v2453 = vpop.f32.mrf.mxu0
          %v2454 = vadd.f32 %v2345, %v2453
          %v2455 = vpop.f32.mrf.mxu0
          %2456 = vmatprep.mubr.f32.mxu0 0.0
          %2457 = vmatmul.mubr.f32.gmra.mxu0 %v2317
          %v2458 = vpop.f32.mrf.mxu0
          %v2459 = vadd.f32 %v2345, %v2458
          %v2460 = vpop.f32.mrf.mxu0
          %2461 = vmatprep.mubr.f32.mxu0 0.0
          %2462 = vmatmul.mubr.f32.gmra.mxu0 %v2318
          %v2463 = vpop.f32.mrf.mxu0
          %v2464 = vadd.f32 %v2345, %v2463
          %v2465 = vpop.f32.mrf.mxu0
          %2466 = vmatprep.mubr.f32.mxu0 0.0
          %2467 = vmatmul.mubr.f32.gmra.mxu0 %v2319
          %v2468 = vpop.f32.mrf.mxu0
          %v2469 = vadd.f32 %v2345, %v2468
          %v2470 = vpop.f32.mrf.mxu0
          %2471 = vmatprep.mubr.f32.mxu0 0.0
          %2472 = vmatmul.mubr.f32.gmra.mxu0 %v2320
          %v2473 = vpop.f32.mrf.mxu0
          %v2474 = vadd.f32 %v2345, %v2473
          %v2475 = vpop.f32.mrf.mxu0
          %2476 = vmatprep.mubr.f32.mxu0 0.0
          %2477 = vmatmul.mubr.f32.gmra.mxu0 %v2321
          %v2478 = vpop.f32.mrf.mxu0
          %v2479 = vadd.f32 %v2345, %v2478
          %v2480 = vpop.f32.mrf.mxu0
          %2481 = vmatprep.mubr.f32.mxu0 0.0
          %2482 = vmatmul.mubr.f32.gmra.mxu0 %v2322
          %v2483 = vpop.f32.mrf.mxu0
          %v2484 = vadd.f32 %v2345, %v2483
          %v2485 = vpop.f32.mrf.mxu0
          %2486 = vmatprep.mubr.f32.mxu0 0.0
          %2487 = vmatmul.mubr.f32.gmra.mxu0 %v2323
          %v2488 = vpop.f32.mrf.mxu0
          %v2489 = vadd.f32 %v2345, %v2488
          %v2490 = vpop.f32.mrf.mxu0
          %2491 = vdwg.mxu0
          %v2492 = vxor.u32 %v2414, 2147483648
          %v2493 = vxor.u32 %v2419, 2147483648
          %v2494 = vxor.u32 %v2424, 2147483648
          %v2495 = vxor.u32 %v2429, 2147483648
          %v2496 = vxor.u32 %v2434, 2147483648
          %v2497 = vxor.u32 %v2439, 2147483648
          %v2498 = vxor.u32 %v2444, 2147483648
          %v2499 = vxor.u32 %v2449, 2147483648
          %v2500 = vxor.u32 %v2454, 2147483648
          %v2501 = vxor.u32 %v2459, 2147483648
          %v2502 = vxor.u32 %v2464, 2147483648
          %v2503 = vxor.u32 %v2469, 2147483648
          %v2504 = vxor.u32 %v2474, 2147483648
          %v2505 = vxor.u32 %v2479, 2147483648
          %v2506 = vxor.u32 %v2484, 2147483648
          %v2507 = vxor.u32 %v2489, 2147483648
          %v2508 = vmul.f32 %v2492, 1.442695
          %v2509 = vpow.pop %v2508
          %v2510 = vmul.f32 %v2493, 1.442695
          %v2511 = vpow.pop %v2510
          %v2512 = vmul.f32 %v2494, 1.442695
          %v2513 = vpow.pop %v2512
          %v2514 = vmul.f32 %v2495, 1.442695
          %v2515 = vpow.pop %v2514
          %v2516 = vmul.f32 %v2496, 1.442695
          %v2517 = vpow.pop %v2516
          %v2518 = vmul.f32 %v2497, 1.442695
          %v2519 = vpow.pop %v2518
          %v2520 = vmul.f32 %v2498, 1.442695
          %v2521 = vpow.pop %v2520
          %v2522 = vmul.f32 %v2499, 1.442695
          %v2523 = vpow.pop %v2522
          %v2524 = vmul.f32 %v2500, 1.442695
          %v2525 = vpow.pop %v2524
          %v2526 = vmul.f32 %v2501, 1.442695
          %v2527 = vpow.pop %v2526
          %v2528 = vmul.f32 %v2502, 1.442695
          %v2529 = vpow.pop %v2528
          %v2530 = vmul.f32 %v2503, 1.442695
          %v2531 = vpow.pop %v2530
          %v2532 = vmul.f32 %v2504, 1.442695
          %v2533 = vpow.pop %v2532
          %v2534 = vmul.f32 %v2505, 1.442695
          %v2535 = vpow.pop %v2534
          %v2536 = vmul.f32 %v2506, 1.442695
          %v2537 = vpow.pop %v2536
          %v2538 = vmul.f32 %v2507, 1.442695
          %v2539 = vpow.pop %v2538
          %v2540 = vadd.f32 %v2509, 1.0
          %v2541 = vadd.f32 %v2511, 1.0
          %v2542 = vadd.f32 %v2513, 1.0
          %v2543 = vadd.f32 %v2515, 1.0
          %v2544 = vadd.f32 %v2517, 1.0
          %v2545 = vadd.f32 %v2519, 1.0
          %v2546 = vadd.f32 %v2521, 1.0
          %v2547 = vadd.f32 %v2523, 1.0
          %v2548 = vadd.f32 %v2525, 1.0
          %v2549 = vadd.f32 %v2527, 1.0
          %v2550 = vadd.f32 %v2529, 1.0
          %v2551 = vadd.f32 %v2531, 1.0
          %v2552 = vadd.f32 %v2533, 1.0
          %v2553 = vadd.f32 %v2535, 1.0
          %v2554 = vadd.f32 %v2537, 1.0
          %v2555 = vadd.f32 %v2539, 1.0
          %v2556 = vrcp.pop %v2540
          %v2557 = vmul.f32 1.0, %v2556
          %v2558 = vrcp.pop %v2541
          %v2559 = vmul.f32 1.0, %v2558
          %v2560 = vrcp.pop %v2542
          %v2561 = vmul.f32 1.0, %v2560
          %v2562 = vrcp.pop %v2543
          %v2563 = vmul.f32 1.0, %v2562
          %v2564 = vrcp.pop %v2544
          %v2565 = vmul.f32 1.0, %v2564
          %v2566 = vrcp.pop %v2545
          %v2567 = vmul.f32 1.0, %v2566
          %v2568 = vrcp.pop %v2546
          %v2569 = vmul.f32 1.0, %v2568
          %v2570 = vrcp.pop %v2547
          %v2571 = vmul.f32 1.0, %v2570
          %v2572 = vrcp.pop %v2548
          %v2573 = vmul.f32 1.0, %v2572
          %v2574 = vrcp.pop %v2549
          %v2575 = vmul.f32 1.0, %v2574
          %v2576 = vrcp.pop %v2550
          %v2577 = vmul.f32 1.0, %v2576
          %v2578 = vrcp.pop %v2551
          %v2579 = vmul.f32 1.0, %v2578
          %v2580 = vrcp.pop %v2552
          %v2581 = vmul.f32 1.0, %v2580
          %v2582 = vrcp.pop %v2553
          %v2583 = vmul.f32 1.0, %v2582
          %v2584 = vrcp.pop %v2554
          %v2585 = vmul.f32 1.0, %v2584
          %v2586 = vrcp.pop %v2555
          %v2587 = vmul.f32 1.0, %v2586
          %2588 = vst [vmem:[%s286] sm:$0xff] %v2557
          %2589 = vst [vmem:[%s286 + $0x8] sm:$0xff] %v2559
          %2590 = vst [vmem:[%s286 + $0x10] sm:$0xff] %v2561
          %2591 = vst [vmem:[%s286 + $0x18] sm:$0xff] %v2563
          %2592 = vst [vmem:[%s286 + $0x20] sm:$0xff] %v2565
          %2593 = vst [vmem:[%s286 + $0x28] sm:$0xff] %v2567
          %2594 = vst [vmem:[%s286 + $0x30] sm:$0xff] %v2569
          %2595 = vst [vmem:[%s286 + $0x38] sm:$0xff] %v2571
          %2596 = vst [vmem:[%s286 + $0x40] sm:$0xff] %v2573
          %2597 = vst [vmem:[%s286 + $0x48] sm:$0xff] %v2575
          %2598 = vst [vmem:[%s286 + $0x50] sm:$0xff] %v2577
          %2599 = vst [vmem:[%s286 + $0x58] sm:$0xff] %v2579
          %2600 = vst [vmem:[%s286 + $0x60] sm:$0xff] %v2581
          %2601 = vst [vmem:[%s286 + $0x68] sm:$0xff] %v2583
          %2602 = vst [vmem:[%s286 + $0x70] sm:$0xff] %v2585
          %2603 = vst [vmem:[%s286 + $0x78] sm:$0xff] %v2587
        $region56: #{tpu_custom_call.1} parent=43 // pred_fallthru
          _
        %s2604 = sand.u32 %s176, 1
        %s2605 = scalar_lea.sflag [#allocation6], %s2604
        %s2606 = sand.u32 %s176, 1
        %s2607 = smul.addr %s2606, 128
        %s2608 = scalar_lea.vmem [#allocation7], %s2607
        // Predicated region
        $region57: #{tpu_custom_call.1} parent=43 // pred_check
          %p2609 = pneg %p186
        $region58: #{tpu_custom_call.1} parent=43 // pred_check_branch
          %2611 = sbr.rel (%p2609) target = $region60
        $region59: #{tpu_custom_call.1} parent=43 // pred_region
          %s2613 = ssub.s32 2048, 2048
          %2614 = vsyncadd %s2605, %s2613
          %s2615 = smul.addr %s27, 16
          %s2616 = smul.addr %s2615, 128
          %s2617 = scalar_lea.hbm %s6, %s2616
          %s2618 = sshll.u32 %s2608, 4
          %s2619 = int_to_ptr.vmem [resolvable:$true] %s2618
          %2624 = dma.vmem_to_hbm [thread:$0]  %s2619, 2048, %s2617, %s2605, 128, 128, 8
        $region60: #{tpu_custom_call.1} parent=43 // pred_fallthru
          _
      $region44: #{tpu_custom_call.1} parent=5 // pred_fallthru
        _
      %p2625 = scmp.le.s32.totalorder 2, %s18
      // Predicated region
      $region61: #{tpu_custom_call.1} parent=5 // pred_check
        %p2626 = pneg %p2625
      $region62: #{tpu_custom_call.1} parent=5 // pred_check_branch
        %2628 = sbr.rel (%p2626) target = $region64
      $region63: #{tpu_custom_call.1} parent=5 // pred_region
        %s2629 = ssub.s32 %s18, 2
        // Predicated region
        $region65: #{tpu_custom_call.1} parent=63 // pred_check
          %p2630 = pneg %p192
        $region66: #{tpu_custom_call.1} parent=63 // pred_check_branch
          %2632 = sbr.rel (%p2630) target = $region68
        $region67: #{tpu_custom_call.1} parent=63 // pred_region
          %s2633 = sand.u32 %s177, 1
          %s2634 = scalar_lea.sflag [#allocation6], %s2633
          %s2635 = sand.u32 %s177, 1
          %s2636 = smul.addr %s2635, 128
          %s2637 = scalar_lea.vmem [#allocation7], %s2636
          %2638 = dma.done %s2634, 2048
        $region68: #{tpu_custom_call.1} parent=63 // pred_fallthru
          _
      $region64: #{tpu_custom_call.1} parent=5 // pred_fallthru
        _
    $region6: #{tpu_custom_call.1} parent=1 // loop_footer
      %s22 = sadd.s32 1, %s18
    $region7: #{tpu_custom_call.1} parent=1 // loop_footer_branch
      %17 = sbr.rel target = $region3
    $region8: #{tpu_custom_call.1} parent=1 // loop_exit
      _
    %2639 = vsyncpa [#allocation5], 1
    %s2640 = scalar_lea.sflag [#allocation5], 1
    %2641 = vsyncpa %s2640, 1
    %2642 = vsyncpa [#allocation6], 1
    %s2643 = scalar_lea.sflag [#allocation6], 1
    %2644 = vsyncpa %s2643, 1

</llo_original>
